<compile_context>
chip_gen: v6e
topology: v6e:2x2x1
jax: 0.10.0
libtpu: 0.0.40
codegen_flags: <defaults>
</compile_context>

<pallas_src>
import functools

import jax
import jax.numpy as jnp
from jax.experimental import pallas as pl
from jax.experimental.pallas import tpu as pltpu


# ---------------------------------------------------------------------------
# Fully fused CSP kernel: conv1+conv2 -> b_conv1 -> 3x3+shortcut -> conv3
# ---------------------------------------------------------------------------
def _csp_fused_kernel(x_mid_ref, x_top_ref, x_bot_ref,
                      w12_ref, b12_ref, wb1_ref, bb1_ref,
                      w33k_ref, b33_ref, w3a_ref, w3b_ref, b3_ref,
                      o_ref, *, img_h):
    _, th, w, cin = x_mid_ref.shape
    h = wb1_ref.shape[0]                        # hidden channels
    cout = o_ref.shape[-1]
    i = pl.program_id(1)
    f32, bf16 = jnp.float32, jnp.bfloat16

    # (TH+2)-row window of x: main tile plus clamped 1-row vertical halos.
    x_win = jnp.concatenate(
        [x_top_ref[...][0], x_mid_ref[...][0], x_bot_ref[...][0]], axis=0)
    xw = x_win.reshape((th + 2) * w, cin)       # bf16 operand

    # conv1 + conv2 (1x1, BN scale folded into weights): one x read, one matmul.
    x12 = jnp.dot(xw, w12_ref[...], preferred_element_type=f32) + b12_ref[...]
    x12 = jnp.maximum(x12, 0.0)                 # ((TH+2)*W, 2h) f32, stays in VMEM
    x1_win = x12[:, :h]                         # feeds b_conv1 (needs halo rows)
    x1_mid = x12[w:(th + 1) * w, :h]            # shortcut add (main rows only)
    x2_mid = x12[w:(th + 1) * w, h:]            # conv3 second half

    # b_conv1 (1x1, BN folded, ReLU) over the full window -> t (never in HBM).
    t = jnp.dot(x1_win.astype(bf16), wb1_ref[...],
                preferred_element_type=f32) + bb1_ref[...]
    t = jnp.maximum(t, 0.0).reshape(th + 2, w, h)

    # Zero t rows that fall outside the image (== zero padding of t for the
    # 3x3 conv).  The global-row mask also covers a partial last H tile under
    # the cdiv grid (one cheap VPU select).
    row = jax.lax.broadcasted_iota(jnp.int32, (th + 2, 1, 1), 0)
    grow = i * th + row - 1
    t = jnp.where(jnp.logical_and(grow >= 0, grow < img_h), t, 0.0)

    # Width taps: zero-filled shifted copies, lane-concat -> K = 3h operand.
    zcol = jnp.zeros((th + 2, 1, h), f32)
    t_m1 = jnp.concatenate([zcol, t[:, :w - 1, :]], axis=1)   # taps at column c-1
    t_p1 = jnp.concatenate([t[:, 1:, :], zcol], axis=1)       # taps at column c+1
    t3 = jnp.concatenate([t_m1, t, t_p1], axis=-1).astype(bf16)   # (TH+2, W, 3h)

    # 3x3 conv (BN folded) as 3 matmuls with K=3h; first tap defines acc.
    acc = None
    for dy in range(3):
        part = jnp.dot(t3[dy:dy + th].reshape(th * w, 3 * h), w33k_ref[dy],
                       preferred_element_type=f32)
        acc = part if acc is None else acc + part
    y = jnp.maximum(acc + b33_ref[...], 0.0) + x1_mid         # ReLU + shortcut

    # conv3 over the virtual concat [y | x2] via split weights (no concat copy).
    out = (jnp.dot(y.astype(bf16), w3a_ref[...], preferred_element_type=f32)
           + jnp.dot(x2_mid.astype(bf16), w3b_ref[...], preferred_element_type=f32)
           + b3_ref[...])
    o_ref[...] = jnp.maximum(out, 0.0).reshape(1, th, w, cout).astype(o_ref.dtype)


def _vmem_budget_bytes():
    """~3/4 of physical VMEM, capped: ~48 MiB on v7x, ~96 MiB on v5e/v6e."""
    try:
        phys = int(pltpu.get_tpu_info().vmem_capacity_bytes)
    except Exception:
        phys = 128 * 1024 * 1024
    return max(32 * 1024 * 1024, min(phys * 3 // 4, 100 * 1024 * 1024))


def csp_layer(x_nhwc, params, *, h_block=32, vmem_limit_bytes=None):
    """CSPLayer forward, NHWC in / NHWC out, single fused Pallas kernel.

    h_block = output rows per grid step.  Guidance (per review): ~16-32 on v7x
    (64 MiB VMEM, keep the (N x nH) grid >= 2 steps for the 2 TensorCores),
    up to ~64 on v5e/v6e (128 MiB VMEM).
    """
    n, hh, ww, cin = x_nhwc.shape
    h = params["wb1"].shape[0]
    cout = params["w3a"].shape[1]
    th = max(1, min(h_block, hh))
    nh = pl.cdiv(hh, th)
    if vmem_limit_bytes is None:
        vmem_limit_bytes = _vmem_budget_bytes()

    x = x_nhwc.astype(jnp.bfloat16)
    kernel = functools.partial(_csp_fused_kernel, img_h=hh)
    return pl.pallas_call(
        kernel,
        out_shape=jax.ShapeDtypeStruct((n, hh, ww, cout), jnp.bfloat16),
        grid=(n, nh),
        in_specs=[
            # main TH-row tile of x
            pl.BlockSpec((1, th, ww, cin), lambda b, i: (b, i, 0, 0)),
            # 1-row vertical halos, clamped at the image edge (zeroed in-kernel)
            pl.BlockSpec((1, 1, ww, cin),
                         lambda b, i: (b, jnp.maximum(i * th - 1, 0), 0, 0)),
            pl.BlockSpec((1, 1, ww, cin),
                         lambda b, i: (b, jnp.minimum(i * th + th, hh - 1), 0, 0)),
            pl.BlockSpec((cin, 2 * h), lambda b, i: (0, 0)),        # w12  (folded)
            pl.BlockSpec((1, 2 * h), lambda b, i: (0, 0)),          # b12
            pl.BlockSpec((h, h), lambda b, i: (0, 0)),              # wb1  (folded)
            pl.BlockSpec((1, h), lambda b, i: (0, 0)),              # bb1
            pl.BlockSpec((3, 3 * h, h), lambda b, i: (0, 0, 0)),    # w33 in K=3h form
            pl.BlockSpec((1, h), lambda b, i: (0, 0)),              # b33
            pl.BlockSpec((h, cout), lambda b, i: (0, 0)),           # w3a  (folded)
            pl.BlockSpec((h, cout), lambda b, i: (0, 0)),           # w3b  (folded)
            pl.BlockSpec((1, cout), lambda b, i: (0, 0)),           # b3
        ],
        out_specs=pl.BlockSpec((1, th, ww, cout), lambda b, i: (b, i, 0, 0)),
        compiler_params=pltpu.CompilerParams(
            dimension_semantics=("parallel", "parallel"),
            vmem_limit_bytes=vmem_limit_bytes),
    )(x, x, x,
      params["w12"], params["b12"], params["wb1"], params["bb1"],
      params["w33k"], params["b33"], params["w3a"], params["w3b"], params["b3"])


# ---------------------------------------------------------------------------
# Deterministic parameters (raw = PyTorch-like; fused = kernel form)
# ---------------------------------------------------------------------------
def _bn_fold(key, c, eps=1e-5):
    k1, k2, k3, k4 = jax.random.split(key, 4)
    gamma = jax.random.uniform(k1, (c,), minval=0.5, maxval=1.5)
    beta = 0.1 * jax.random.normal(k2, (c,))
    mean = 0.1 * jax.random.normal(k3, (c,))
    var = jax.random.uniform(k4, (c,), minval=0.5, maxval=1.5)
    scale = gamma / jnp.sqrt(var + eps)
    bias = beta - mean * scale
    return scale.astype(jnp.float32), bias.astype(jnp.float32)


def make_params(key, inc, ouc, expand=0.5):
    hidc = int(ouc * expand)
    ks = jax.random.split(key, 10)

    def w1x1(k, ci, co):
        return (0.1 * jax.random.normal(k, (ci, co))).astype(jnp.float32)

    raw = {"hidc": hidc}
    raw["conv1"] = (w1x1(ks[0], inc, hidc), *_bn_fold(ks[1], hidc))
    raw["conv2"] = (w1x1(ks[2], inc, hidc), *_bn_fold(ks[3], hidc))
    raw["conv3"] = (w1x1(ks[4], 2 * hidc, ouc), *_bn_fold(ks[5], ouc))
    raw["b_conv1"] = (w1x1(ks[6], hidc, hidc), *_bn_fold(ks[7], hidc))
    w3 = (0.1 * jax.random.normal(ks[8], (3, 3, hidc, hidc))).astype(jnp.float32)
    raw["b_conv2"] = (w3, *_bn_fold(ks[9], hidc))
    return raw


def fuse_params(raw):
    """Fold BN scale into weights, cast weights to bf16, keep biases f32."""
    hidc = raw["hidc"]
    bf16 = jnp.bfloat16
    w1, s1, b1 = raw["conv1"]
    w2, s2, b2 = raw["conv2"]
    w3, s3, b3 = raw["conv3"]
    wb1, sb1, bb1 = raw["b_conv1"]
    w33, s33, b33 = raw["b_conv2"]
    f = {}
    f["w12"] = jnp.concatenate([w1 * s1[None, :], w2 * s2[None, :]],
                               axis=1).astype(bf16)
    f["b12"] = jnp.concatenate([b1, b2]).reshape(1, -1)
    f["wb1"] = (wb1 * sb1[None, :]).astype(bf16)
    f["bb1"] = bb1.reshape(1, -1)
    # (3,3,h,h) -> (3, 3h, h): K index = dx*h + cin, matching the lane-concat
    # [t(x-1) | t(x) | t(x+1)] operand built in the kernel.
    f["w33k"] = (w33 * s33[None, None, None, :]).reshape(3, 3 * hidc, hidc).astype(bf16)
    f["b33"] = b33.reshape(1, -1)
    w3f = w3 * s3[None, :]
    f["w3a"] = w3f[:hidc].astype(bf16)     # conv3 split -> no activation concat
    f["w3b"] = w3f[hidc:].astype(bf16)
    f["b3"] = b3.reshape(1, -1)
    return f


# ---------------------------------------------------------------------------
# Pure-JAX reference (unfused, PyTorch-structured, f32, NHWC)
# ---------------------------------------------------------------------------
def _ref_conv1x1(x, w, s, b):
    y = jnp.einsum("nhwc,cd->nhwd", x, w) * s + b
    return jnp.maximum(y, 0.0)


def _ref_conv3x3(x, w, s, b):
    hh, ww = x.shape[1], x.shape[2]
    xp = jnp.pad(x, ((0, 0), (1, 1), (1, 1), (0, 0)))
    y = 0.0
    for dy in range(3):
        for dx in range(3):
            y = y + jnp.einsum("nhwc,cd->nhwd",
                               xp[:, dy:dy + hh, dx:dx + ww, :], w[dy, dx])
    return jnp.maximum(y * s + b, 0.0)


def csp_layer_ref(x_nhwc, raw):
    x1 = _ref_conv1x1(x_nhwc, *raw["conv1"])
    x2 = _ref_conv1x1(x_nhwc, *raw["conv2"])
    t = _ref_conv1x1(x1, *raw["b_conv1"])
    y = _ref_conv3x3(t, *raw["b_conv2"]) + x1
    xc = jnp.concatenate([y, x2], axis=-1)
    return _ref_conv1x1(xc, *raw["conv3"])


# ---------------------------------------------------------------------------
if __name__ == "__main__":
    inc, ouc = 4, 8
    key = jax.random.PRNGKey(0)
    kx, kp = jax.random.split(key)

    # Spec input is NCHW (2, 4, 16, 16); the layer is NHWC-native (per review:
    # no per-layer NCHW<->NHWC transposes), so convert once here.
    x_nchw = jax.random.normal(kx, (2, inc, 16, 16), dtype=jnp.float32)
    x_nhwc = jnp.transpose(x_nchw, (0, 2, 3, 1))
    # Feed the same bf16-quantized input to kernel and reference so the check
    # isolates kernel numerics from input quantization.
    x_q = x_nhwc.astype(jnp.bfloat16).astype(jnp.float32)

    raw = make_params(kp, inc, ouc)
    fused = fuse_params(raw)

    # Small H tile so the halo / multi-tile path is exercised at toy shapes
    # (h_block=8 -> 2 H tiles per image, 4 grid steps total).
    fwd = jax.jit(functools.partial(csp_layer, params=fused, h_block=8))
    out = fwd(x_q)
    jax.block_until_ready(out)

    ref = csp_layer_ref(x_q, raw)
    assert out.shape == (2, 16, 16, ouc), out.shape
    out_f32 = out.astype(jnp.float32)
    err = float(jnp.max(jnp.abs(out_f32 - ref)))
    # bf16 weights/activations vs. the f32 reference: loosened tolerance.
    assert jnp.allclose(out_f32, ref, rtol=5e-2, atol=8e-2), err

    print("KERNEL_OK")
</pallas_src>

<mosaic_0001>
module attributes {stable_mosaic.version = 11 : i64} {
  func.func @_csp_fused_kernel(%arg0: i32, %arg1: i32, %arg2: memref<1x8x16x4xbf16, #tpu.memory_space<vmem>>, %arg3: memref<1x1x16x4xbf16, #tpu.memory_space<vmem>>, %arg4: memref<1x1x16x4xbf16, #tpu.memory_space<vmem>>, %arg5: memref<4x8xbf16, #tpu.memory_space<vmem>>, %arg6: memref<1x8xf32, #tpu.memory_space<vmem>>, %arg7: memref<4x4xbf16, #tpu.memory_space<vmem>>, %arg8: memref<1x4xf32, #tpu.memory_space<vmem>>, %arg9: memref<3x12x4xbf16, #tpu.memory_space<vmem>>, %arg10: memref<1x4xf32, #tpu.memory_space<vmem>>, %arg11: memref<4x8xbf16, #tpu.memory_space<vmem>>, %arg12: memref<4x8xbf16, #tpu.memory_space<vmem>>, %arg13: memref<1x8xf32, #tpu.memory_space<vmem>>, %arg14: memref<1x8x16x8xbf16, #tpu.memory_space<vmem>>) attributes {dimension_semantics = [#tpu.dimension_semantics<parallel>, #tpu.dimension_semantics<parallel>], iteration_bounds = array<i64: 2, 2>, scalar_prefetch = 0 : i64, scratch_operands = 0 : i64, tpu.core_type = #tpu.core_type<tc>, window_params = [{transform_indices = @transform_0, window_bounds = array<i64: 1, 8, 16, 4>}, {transform_indices = @transform_1, window_bounds = array<i64: 1, 1, 16, 4>}, {transform_indices = @transform_2, window_bounds = array<i64: 1, 1, 16, 4>}, {pipeline_mode = #tpu.pipeline_mode<synchronous>, transform_indices = @transform_3, window_bounds = array<i64: 4, 8>}, {pipeline_mode = #tpu.pipeline_mode<synchronous>, transform_indices = @transform_4, window_bounds = array<i64: 1, 8>}, {pipeline_mode = #tpu.pipeline_mode<synchronous>, transform_indices = @transform_5, window_bounds = array<i64: 4, 4>}, {pipeline_mode = #tpu.pipeline_mode<synchronous>, transform_indices = @transform_6, window_bounds = array<i64: 1, 4>}, {pipeline_mode = #tpu.pipeline_mode<synchronous>, transform_indices = @transform_7, window_bounds = array<i64: 3, 12, 4>}, {pipeline_mode = #tpu.pipeline_mode<synchronous>, transform_indices = @transform_8, window_bounds = array<i64: 1, 4>}, {pipeline_mode = #tpu.pipeline_mode<synchronous>, transform_indices = @transform_9, window_bounds = array<i64: 4, 8>}, {pipeline_mode = #tpu.pipeline_mode<synchronous>, transform_indices = @transform_10, window_bounds = array<i64: 4, 8>}, {pipeline_mode = #tpu.pipeline_mode<synchronous>, transform_indices = @transform_11, window_bounds = array<i64: 1, 8>}, {transform_indices = @transform_12, window_bounds = array<i64: 1, 8, 16, 8>}]} {
    %c0 = arith.constant 0 : index
    %c0_0 = arith.constant 0 : index
    %c0_1 = arith.constant 0 : index
    %c0_2 = arith.constant 0 : index
    %0 = vector.load %arg3[%c0, %c0_0, %c0_1, %c0_2] : memref<1x1x16x4xbf16, #tpu.memory_space<vmem>>, vector<1x1x16x4xbf16>
    %1 = vector.shape_cast %0 : vector<1x1x16x4xbf16> to vector<1x16x4xbf16>
    %c0_3 = arith.constant 0 : index
    %c0_4 = arith.constant 0 : index
    %c0_5 = arith.constant 0 : index
    %c0_6 = arith.constant 0 : index
    %2 = vector.load %arg2[%c0_3, %c0_4, %c0_5, %c0_6] : memref<1x8x16x4xbf16, #tpu.memory_space<vmem>>, vector<1x8x16x4xbf16>
    %3 = vector.shape_cast %2 : vector<1x8x16x4xbf16> to vector<8x16x4xbf16>
    %c0_7 = arith.constant 0 : index
    %c0_8 = arith.constant 0 : index
    %c0_9 = arith.constant 0 : index
    %c0_10 = arith.constant 0 : index
    %4 = vector.load %arg4[%c0_7, %c0_8, %c0_9, %c0_10] : memref<1x1x16x4xbf16, #tpu.memory_space<vmem>>, vector<1x1x16x4xbf16>
    %5 = vector.shape_cast %4 : vector<1x1x16x4xbf16> to vector<1x16x4xbf16>
    %6 = tpu.concatenate %1, %3, %5 in 0 : vector<1x16x4xbf16>, vector<8x16x4xbf16>, vector<1x16x4xbf16> -> vector<10x16x4xbf16>
    %7 = vector.shape_cast %6 : vector<10x16x4xbf16> to vector<160x4xbf16>
    %c0_11 = arith.constant 0 : index
    %c0_12 = arith.constant 0 : index
    %8 = vector.load %arg5[%c0_11, %c0_12] : memref<4x8xbf16, #tpu.memory_space<vmem>>, vector<4x8xbf16>
    %cst = arith.constant dense<0.000000e+00> : vector<160x8xf32>
    %9 = tpu.matmul %7, %8, %cst {dimension_numbers = #tpu.dot_dimension_numbers<[1], [0], [0], [1], [0, 0, 1, 1], [], []>} : vector<160x4xbf16>, vector<4x8xbf16>, vector<160x8xf32> -> vector<160x8xf32>
    %c0_13 = arith.constant 0 : index
    %c0_14 = arith.constant 0 : index
    %10 = vector.load %arg6[%c0_13, %c0_14] : memref<1x8xf32, #tpu.memory_space<vmem>>, vector<1x8xf32>
    %11 = vector.broadcast %10 : vector<1x8xf32> to vector<160x8xf32>
    %12 = arith.addf %9, %11 : vector<160x8xf32>
    %cst_15 = arith.constant 0.000000e+00 : f32
    %13 = vector.broadcast %cst_15 : f32 to vector<160x8xf32>
    %14 = arith.maximumf %12, %13 : vector<160x8xf32>
    %15 = vector.extract_strided_slice %14 {offsets = [0, 0], sizes = [160, 4], strides = [1, 1]} : vector<160x8xf32> to vector<160x4xf32>
    %16 = vector.extract_strided_slice %14 {offsets = [16, 0], sizes = [128, 4], strides = [1, 1]} : vector<160x8xf32> to vector<128x4xf32>
    %17 = vector.extract_strided_slice %14 {offsets = [16, 4], sizes = [128, 4], strides = [1, 1]} : vector<160x8xf32> to vector<128x4xf32>
    %18 = arith.truncf %15 : vector<160x4xf32> to vector<160x4xbf16>
    %c0_16 = arith.constant 0 : index
    %c0_17 = arith.constant 0 : index
    %19 = vector.load %arg7[%c0_16, %c0_17] : memref<4x4xbf16, #tpu.memory_space<vmem>>, vector<4x4xbf16>
    %cst_18 = arith.constant dense<0.000000e+00> : vector<160x4xf32>
    %20 = tpu.matmul %18, %19, %cst_18 {dimension_numbers = #tpu.dot_dimension_numbers<[1], [0], [0], [1], [0, 0, 1, 1], [], []>} : vector<160x4xbf16>, vector<4x4xbf16>, vector<160x4xf32> -> vector<160x4xf32>
    %c0_19 = arith.constant 0 : index
    %c0_20 = arith.constant 0 : index
    %21 = vector.load %arg8[%c0_19, %c0_20] : memref<1x4xf32, #tpu.memory_space<vmem>>, vector<1x4xf32>
    %22 = vector.broadcast %21 : vector<1x4xf32> to vector<160x4xf32>
    %23 = arith.addf %20, %22 : vector<160x4xf32>
    %cst_21 = arith.constant 0.000000e+00 : f32
    %24 = vector.broadcast %cst_21 : f32 to vector<160x4xf32>
    %25 = arith.maximumf %23, %24 : vector<160x4xf32>
    %26 = vector.shape_cast %25 : vector<160x4xf32> to vector<10x16x4xf32>
    %27 = tpu.iota {dimensions = array<i32: 0>} : vector<10x1x1xi32>
    %c8_i32 = arith.constant 8 : i32
    %28 = arith.muli %arg1, %c8_i32 : i32
    %29 = vector.broadcast %28 : i32 to vector<10x1x1xi32>
    %30 = arith.addi %29, %27 : vector<10x1x1xi32>
    %c1_i32 = arith.constant 1 : i32
    %31 = vector.broadcast %c1_i32 : i32 to vector<10x1x1xi32>
    %32 = arith.subi %30, %31 : vector<10x1x1xi32>
    %c0_i32 = arith.constant 0 : i32
    %33 = vector.broadcast %c0_i32 : i32 to vector<10x1x1xi32>
    %34 = arith.cmpi sge, %32, %33 : vector<10x1x1xi32>
    %c16_i32 = arith.constant 16 : i32
    %35 = vector.broadcast %c16_i32 : i32 to vector<10x1x1xi32>
    %36 = arith.cmpi slt, %32, %35 : vector<10x1x1xi32>
    %37 = arith.andi %34, %36 : vector<10x1x1xi1>
    %cst_22 = arith.constant 0.000000e+00 : f32
    %38 = vector.shape_cast %37 : vector<10x1x1xi1> to vector<10x1x1xi1>
    %39 = vector.broadcast %38 : vector<10x1x1xi1> to vector<10x16x4xi1>
    %40 = vector.broadcast %cst_22 : f32 to vector<10x16x4xf32>
    %41 = arith.select %39, %26, %40 : vector<10x16x4xi1>, vector<10x16x4xf32>
    %cst_23 = arith.constant 0.000000e+00 : f32
    %42 = vector.broadcast %cst_23 : f32 to vector<10x1x4xf32>
    %43 = vector.extract_strided_slice %41 {offsets = [0, 0, 0], sizes = [10, 15, 4], strides = [1, 1, 1]} : vector<10x16x4xf32> to vector<10x15x4xf32>
    %44 = tpu.concatenate %42, %43 in 1 : vector<10x1x4xf32>, vector<10x15x4xf32> -> vector<10x16x4xf32>
    %45 = vector.extract_strided_slice %41 {offsets = [0, 1, 0], sizes = [10, 15, 4], strides = [1, 1, 1]} : vector<10x16x4xf32> to vector<10x15x4xf32>
    %46 = tpu.concatenate %45, %42 in 1 : vector<10x15x4xf32>, vector<10x1x4xf32> -> vector<10x16x4xf32>
    %47 = tpu.concatenate %44, %41, %46 in 2 : vector<10x16x4xf32>, vector<10x16x4xf32>, vector<10x16x4xf32> -> vector<10x16x12xf32>
    %48 = arith.truncf %47 : vector<10x16x12xf32> to vector<10x16x12xbf16>
    %49 = vector.extract_strided_slice %48 {offsets = [0, 0, 0], sizes = [8, 16, 12], strides = [1, 1, 1]} : vector<10x16x12xbf16> to vector<8x16x12xbf16>
    %50 = vector.shape_cast %49 : vector<8x16x12xbf16> to vector<128x12xbf16>
    %c0_24 = arith.constant 0 : index
    %c0_25 = arith.constant 0 : index
    %c0_26 = arith.constant 0 : index
    %51 = vector.load %arg9[%c0_24, %c0_25, %c0_26] : memref<3x12x4xbf16, #tpu.memory_space<vmem>>, vector<1x12x4xbf16>
    %52 = vector.shape_cast %51 : vector<1x12x4xbf16> to vector<12x4xbf16>
    %cst_27 = arith.constant dense<0.000000e+00> : vector<128x4xf32>
    %53 = tpu.matmul %50, %52, %cst_27 {dimension_numbers = #tpu.dot_dimension_numbers<[1], [0], [0], [1], [0, 0, 1, 1], [], []>} : vector<128x12xbf16>, vector<12x4xbf16>, vector<128x4xf32> -> vector<128x4xf32>
    %54 = vector.extract_strided_slice %48 {offsets = [1, 0, 0], sizes = [8, 16, 12], strides = [1, 1, 1]} : vector<10x16x12xbf16> to vector<8x16x12xbf16>
    %55 = vector.shape_cast %54 : vector<8x16x12xbf16> to vector<128x12xbf16>
    %c1 = arith.constant 1 : index
    %c0_28 = arith.constant 0 : index
    %c0_29 = arith.constant 0 : index
    %56 = vector.load %arg9[%c1, %c0_28, %c0_29] : memref<3x12x4xbf16, #tpu.memory_space<vmem>>, vector<1x12x4xbf16>
    %57 = vector.shape_cast %56 : vector<1x12x4xbf16> to vector<12x4xbf16>
    %cst_30 = arith.constant dense<0.000000e+00> : vector<128x4xf32>
    %58 = tpu.matmul %55, %57, %cst_30 {dimension_numbers = #tpu.dot_dimension_numbers<[1], [0], [0], [1], [0, 0, 1, 1], [], []>} : vector<128x12xbf16>, vector<12x4xbf16>, vector<128x4xf32> -> vector<128x4xf32>
    %59 = arith.addf %53, %58 : vector<128x4xf32>
    %60 = vector.extract_strided_slice %48 {offsets = [2, 0, 0], sizes = [8, 16, 12], strides = [1, 1, 1]} : vector<10x16x12xbf16> to vector<8x16x12xbf16>
    %61 = vector.shape_cast %60 : vector<8x16x12xbf16> to vector<128x12xbf16>
    %c2 = arith.constant 2 : index
    %c0_31 = arith.constant 0 : index
    %c0_32 = arith.constant 0 : index
    %62 = vector.load %arg9[%c2, %c0_31, %c0_32] : memref<3x12x4xbf16, #tpu.memory_space<vmem>>, vector<1x12x4xbf16>
    %63 = vector.shape_cast %62 : vector<1x12x4xbf16> to vector<12x4xbf16>
    %cst_33 = arith.constant dense<0.000000e+00> : vector<128x4xf32>
    %64 = tpu.matmul %61, %63, %cst_33 {dimension_numbers = #tpu.dot_dimension_numbers<[1], [0], [0], [1], [0, 0, 1, 1], [], []>} : vector<128x12xbf16>, vector<12x4xbf16>, vector<128x4xf32> -> vector<128x4xf32>
    %65 = arith.addf %59, %64 : vector<128x4xf32>
    %c0_34 = arith.constant 0 : index
    %c0_35 = arith.constant 0 : index
    %66 = vector.load %arg10[%c0_34, %c0_35] : memref<1x4xf32, #tpu.memory_space<vmem>>, vector<1x4xf32>
    %67 = vector.broadcast %66 : vector<1x4xf32> to vector<128x4xf32>
    %68 = arith.addf %65, %67 : vector<128x4xf32>
    %cst_36 = arith.constant 0.000000e+00 : f32
    %69 = vector.broadcast %cst_36 : f32 to vector<128x4xf32>
    %70 = arith.maximumf %68, %69 : vector<128x4xf32>
    %71 = arith.addf %70, %16 : vector<128x4xf32>
    %72 = arith.truncf %71 : vector<128x4xf32> to vector<128x4xbf16>
    %c0_37 = arith.constant 0 : index
    %c0_38 = arith.constant 0 : index
    %73 = vector.load %arg11[%c0_37, %c0_38] : memref<4x8xbf16, #tpu.memory_space<vmem>>, vector<4x8xbf16>
    %cst_39 = arith.constant dense<0.000000e+00> : vector<128x8xf32>
    %74 = tpu.matmul %72, %73, %cst_39 {dimension_numbers = #tpu.dot_dimension_numbers<[1], [0], [0], [1], [0, 0, 1, 1], [], []>} : vector<128x4xbf16>, vector<4x8xbf16>, vector<128x8xf32> -> vector<128x8xf32>
    %75 = arith.truncf %17 : vector<128x4xf32> to vector<128x4xbf16>
    %c0_40 = arith.constant 0 : index
    %c0_41 = arith.constant 0 : index
    %76 = vector.load %arg12[%c0_40, %c0_41] : memref<4x8xbf16, #tpu.memory_space<vmem>>, vector<4x8xbf16>
    %cst_42 = arith.constant dense<0.000000e+00> : vector<128x8xf32>
    %77 = tpu.matmul %75, %76, %cst_42 {dimension_numbers = #tpu.dot_dimension_numbers<[1], [0], [0], [1], [0, 0, 1, 1], [], []>} : vector<128x4xbf16>, vector<4x8xbf16>, vector<128x8xf32> -> vector<128x8xf32>
    %78 = arith.addf %74, %77 : vector<128x8xf32>
    %c0_43 = arith.constant 0 : index
    %c0_44 = arith.constant 0 : index
    %79 = vector.load %arg13[%c0_43, %c0_44] : memref<1x8xf32, #tpu.memory_space<vmem>>, vector<1x8xf32>
    %80 = vector.broadcast %79 : vector<1x8xf32> to vector<128x8xf32>
    %81 = arith.addf %78, %80 : vector<128x8xf32>
    %cst_45 = arith.constant 0.000000e+00 : f32
    %82 = vector.broadcast %cst_45 : f32 to vector<128x8xf32>
    %83 = arith.maximumf %81, %82 : vector<128x8xf32>
    %84 = vector.shape_cast %83 : vector<128x8xf32> to vector<1x8x16x8xf32>
    %85 = arith.truncf %84 : vector<1x8x16x8xf32> to vector<1x8x16x8xbf16>
    %c0_46 = arith.constant 0 : index
    %c0_47 = arith.constant 0 : index
    %c0_48 = arith.constant 0 : index
    %c0_49 = arith.constant 0 : index
    %86 = vector.load %arg14[%c0_46, %c0_47, %c0_48, %c0_49] : memref<1x8x16x8xbf16, #tpu.memory_space<vmem>>, vector<1x8x16x8xbf16>
    tpu.vector_store %arg14[%c0_46, %c0_47, %c0_48, %c0_49], %85 {strides = array<i32>} : memref<1x8x16x8xbf16, #tpu.memory_space<vmem>>, vector<1x8x16x8xbf16>,
    return
  }
  func.func @transform_0(%arg0: i32, %arg1: i32) -> (i32, i32, i32, i32) {
    %c0_i32 = arith.constant 0 : i32
    %c0_i32_0 = arith.constant 0 : i32
    %c0_i32_1 = arith.constant 0 : i32
    return %arg0, %arg1, %c0_i32, %c0_i32_0 : i32, i32, i32, i32
  }
  func.func @transform_1(%arg0: i32, %arg1: i32) -> (i32, i32, i32, i32) {
    %c8_i32 = arith.constant 8 : i32
    %0 = arith.muli %arg1, %c8_i32 : i32
    %c1_i32 = arith.constant 1 : i32
    %1 = arith.subi %0, %c1_i32 : i32
    %c0_i32 = arith.constant 0 : i32
    %2 = arith.maxsi %1, %c0_i32 : i32
    %c0_i32_0 = arith.constant 0 : i32
    %c0_i32_1 = arith.constant 0 : i32
    %c0_i32_2 = arith.constant 0 : i32
    return %arg0, %2, %c0_i32_0, %c0_i32_1 : i32, i32, i32, i32
  }
  func.func @transform_2(%arg0: i32, %arg1: i32) -> (i32, i32, i32, i32) {
    %c8_i32 = arith.constant 8 : i32
    %0 = arith.muli %arg1, %c8_i32 : i32
    %c8_i32_0 = arith.constant 8 : i32
    %1 = arith.addi %0, %c8_i32_0 : i32
    %c15_i32 = arith.constant 15 : i32
    %2 = arith.minsi %1, %c15_i32 : i32
    %c0_i32 = arith.constant 0 : i32
    %c0_i32_1 = arith.constant 0 : i32
    %c0_i32_2 = arith.constant 0 : i32
    return %arg0, %2, %c0_i32, %c0_i32_1 : i32, i32, i32, i32
  }
  func.func @transform_3(%arg0: i32, %arg1: i32) -> (i32, i32) {
    %c0_i32 = arith.constant 0 : i32
    %c0_i32_0 = arith.constant 0 : i32
    %c0_i32_1 = arith.constant 0 : i32
    return %c0_i32, %c0_i32_0 : i32, i32
  }
  func.func @transform_4(%arg0: i32, %arg1: i32) -> (i32, i32) {
    %c0_i32 = arith.constant 0 : i32
    %c0_i32_0 = arith.constant 0 : i32
    %c0_i32_1 = arith.constant 0 : i32
    return %c0_i32, %c0_i32_0 : i32, i32
  }
  func.func @transform_5(%arg0: i32, %arg1: i32) -> (i32, i32) {
    %c0_i32 = arith.constant 0 : i32
    %c0_i32_0 = arith.constant 0 : i32
    %c0_i32_1 = arith.constant 0 : i32
    return %c0_i32, %c0_i32_0 : i32, i32
  }
  func.func @transform_6(%arg0: i32, %arg1: i32) -> (i32, i32) {
    %c0_i32 = arith.constant 0 : i32
    %c0_i32_0 = arith.constant 0 : i32
    %c0_i32_1 = arith.constant 0 : i32
    return %c0_i32, %c0_i32_0 : i32, i32
  }
  func.func @transform_7(%arg0: i32, %arg1: i32) -> (i32, i32, i32) {
    %c0_i32 = arith.constant 0 : i32
    %c0_i32_0 = arith.constant 0 : i32
    %c0_i32_1 = arith.constant 0 : i32
    %c0_i32_2 = arith.constant 0 : i32
    return %c0_i32, %c0_i32_0, %c0_i32_1 : i32, i32, i32
  }
  func.func @transform_8(%arg0: i32, %arg1: i32) -> (i32, i32) {
    %c0_i32 = arith.constant 0 : i32
    %c0_i32_0 = arith.constant 0 : i32
    %c0_i32_1 = arith.constant 0 : i32
    return %c0_i32, %c0_i32_0 : i32, i32
  }
  func.func @transform_9(%arg0: i32, %arg1: i32) -> (i32, i32) {
    %c0_i32 = arith.constant 0 : i32
    %c0_i32_0 = arith.constant 0 : i32
    %c0_i32_1 = arith.constant 0 : i32
    return %c0_i32, %c0_i32_0 : i32, i32
  }
  func.func @transform_10(%arg0: i32, %arg1: i32) -> (i32, i32) {
    %c0_i32 = arith.constant 0 : i32
    %c0_i32_0 = arith.constant 0 : i32
    %c0_i32_1 = arith.constant 0 : i32
    return %c0_i32, %c0_i32_0 : i32, i32
  }
  func.func @transform_11(%arg0: i32, %arg1: i32) -> (i32, i32) {
    %c0_i32 = arith.constant 0 : i32
    %c0_i32_0 = arith.constant 0 : i32
    %c0_i32_1 = arith.constant 0 : i32
    return %c0_i32, %c0_i32_0 : i32, i32
  }
  func.func @transform_12(%arg0: i32, %arg1: i32) -> (i32, i32, i32, i32) {
    %c0_i32 = arith.constant 0 : i32
    %c0_i32_0 = arith.constant 0 : i32
    %c0_i32_1 = arith.constant 0 : i32
    return %arg0, %arg1, %c0_i32, %c0_i32_0 : i32, i32, i32, i32
  }
}

</mosaic_0001>

<llo_original>
// kernel: csp_layer.1
$region0: #{csp_layer.1}
  #allocation0 [shape = 'u32[]', space=smem, size = 0x4, offset = 0x4, fixed_abs, tag = 'smem constant byte address 0x4 - core index']
  #allocation1 [shape = 'u32[144,128]{1,0:T(1,128)}', space=vmem, size = 0x12000, scoped, tag = 'internal scratch']
  %s0 = inlined_call_operand.vmem [shape: bf16[2,16,16,4], index: 0, kind: input, shape index: {}, may-alias: {0,1,2}]
  %s1 = inlined_call_operand.vmem [shape: bf16[2,16,16,4], index: 1, kind: input, shape index: {}, may-alias: {0,1,2}]
  %s2 = inlined_call_operand.vmem [shape: bf16[2,16,16,4], index: 2, kind: input, shape index: {}, may-alias: {0,1,2}]
  %s3 = inlined_call_operand.vmem [shape: bf16[4,8], index: 3, kind: input, shape index: {}]
  %s4 = inlined_call_operand.vmem [shape: f32[1,8], index: 4, kind: input, shape index: {}]
  %s5 = inlined_call_operand.vmem [shape: bf16[4,4], index: 5, kind: input, shape index: {}]
  %s6 = inlined_call_operand.vmem [shape: f32[1,4], index: 6, kind: input, shape index: {}]
  %s7 = inlined_call_operand.vmem [shape: bf16[3,12,4], index: 7, kind: input, shape index: {}]
  %s8 = inlined_call_operand.vmem [shape: f32[1,4], index: 8, kind: input, shape index: {}]
  %s9 = inlined_call_operand.vmem [shape: bf16[4,8], index: 9, kind: input, shape index: {}]
  %s10 = inlined_call_operand.vmem [shape: bf16[4,8], index: 10, kind: input, shape index: {}]
  %s11 = inlined_call_operand.vmem [shape: f32[1,8], index: 11, kind: input, shape index: {}]
  %s12 = inlined_call_operand.vmem [shape: bf16[2,16,16,8], index: 12, kind: output, shape index: {}]
  %s13 = sld [smem:[#allocation0]]
  $region81: #{csp_layer.1} parent=0
    _
  %s15 = ssub.s32 1, %s13
  %s16 = scalar_select 0, %s15, %s13
  loop: start=0, step=1, limit=6
  $region2: #{csp_layer.1} parent=0 // loop_pre_header
    _
  $region3: #{csp_layer.1} parent=0 // loop_header
    %s18 = sphi 0, %s22
    %p19 = scmp.ge.s32.totalorder %s18, 6
    %s25 = sphi 0, %s37
    %s26 = sphi 0, %s33
    %s27 = sphi 0, %s25
    %s28 = sphi 0, %s26
    %s29 = sphi 0, %s27
    %s30 = sphi 0, %s28
    %s42 = sphi 0, %s44
    %s45 = sphi 0, %s42
    %s46 = sphi 0, %s45
    %s62 = sphi 0, %s46
    %s78 = sphi 0, %s80
    %s81 = sphi 0, %s78
    %s82 = sphi 0, %s81
    %s98 = sphi 0, %s82
    %s114 = sphi 0, %s116
    %s117 = sphi 0, %s114
    %s118 = sphi 0, %s117
    %s134 = sphi 0, %s118
    %s138 = sphi 0, %s138
    %s140 = sphi 0, %s138
    %s141 = sphi 0, %s140
    %s155 = sphi 0, %s141
    %s159 = sphi 0, %s159
    %s161 = sphi 0, %s159
    %s162 = sphi 0, %s161
    %s176 = sphi 0, %s162
    %s180 = sphi 0, %s180
    %s182 = sphi 0, %s180
    %s183 = sphi 0, %s182
    %s197 = sphi 0, %s183
    %s201 = sphi 0, %s201
    %s203 = sphi 0, %s201
    %s204 = sphi 0, %s203
    %s218 = sphi 0, %s204
    %s222 = sphi 0, %s222
    %s224 = sphi 0, %s222
    %s225 = sphi 0, %s224
    %s239 = sphi 0, %s225
    %s243 = sphi 0, %s243
    %s245 = sphi 0, %s243
    %s246 = sphi 0, %s245
    %s260 = sphi 0, %s246
    %s264 = sphi 0, %s264
    %s266 = sphi 0, %s264
    %s267 = sphi 0, %s266
    %s281 = sphi 0, %s267
    %s285 = sphi 0, %s285
    %s287 = sphi 0, %s285
    %s288 = sphi 0, %s287
    %s302 = sphi 0, %s288
    %s306 = sphi 0, %s306
    %s308 = sphi 0, %s306
    %s309 = sphi 0, %s308
    %s323 = sphi 0, %s309
    %s331 = sphi 0, %s333
    %s334 = sphi 0, %s331
    %s335 = sphi 0, %s334
    %s351 = sphi 0, %s335
  $region4: #{csp_layer.1} parent=0 // loop_header_branch
    %21 = sbr.rel (%p19) target = $region8
  $region5: #{csp_layer.1} parent=0 // loop_body
    %s23 = ssub.s32 %s18, 1
    %s24 = ssub.s32 %s18, 2
    %s31 = sadd.s32 1, %s26
    %p32 = scmp.ge.s32.totalorder %s31, 2
    %s33 = scalar_select %p32, 0, %s31
    %s34 = sadd.s32 1, %s25
    %s35 = scalar_select %p32, %s34, %s25
    %p36 = scmp.ge.s32.totalorder %s35, 2
    %s37 = scalar_select %p36, 0, %s35
    %s38 = ssub.s32 %s25, %s37
    %s39 = ssub.s32 %s26, %s33
    %s40 = sor.u32 %s38, %s39
    %p41 = scmp.eq.s32.totalorder %s40, 0
    %s43 = sadd.s32 %s42, 1
    %s44 = scalar_select %p41, %s42, %s43
    %p47 = pneg %p41
    %p48 = scmp.eq.s32.totalorder %s18, 3
    %p49 = por %p47, %p48
    %p50 = scmp.ne.s32.totalorder %s42, %s45
    %p51 = scmp.eq.s32.totalorder %s18, 0
    %p52 = por %p50, %p51
    %p53 = scmp.ne.s32.totalorder %s42, %s45
    %p54 = scmp.eq.s32.totalorder %s23, 3
    %p55 = por %p53, %p54
    %p56 = scmp.ne.s32.totalorder %s45, %s46
    %p57 = scmp.eq.s32.totalorder %s23, 0
    %p58 = por %p56, %p57
    %p59 = scmp.ne.s32.totalorder %s45, %s46
    %p60 = scmp.eq.s32.totalorder %s24, 3
    %p61 = por %p59, %p60
    %p63 = scmp.ne.s32.totalorder %s46, %s62
    %p64 = scmp.eq.s32.totalorder %s24, 0
    %p65 = por %p63, %p64
    %s66 = smul.u32 %s26, 8
    %s67 = ssub.s32 %s66, 1
    %p68 = scmp.gt.s32.totalorder %s67, 0
    %s69 = scalar_select %p68, %s67, 0
    %s70 = smul.u32 %s33, 8
    %s71 = ssub.s32 %s70, 1
    %p72 = scmp.gt.s32.totalorder %s71, 0
    %s73 = scalar_select %p72, %s71, 0
    %s74 = ssub.s32 %s25, %s37
    %s75 = ssub.s32 %s69, %s73
    %s76 = sor.u32 %s74, %s75
    %p77 = scmp.eq.s32.totalorder %s76, 0
    %s79 = sadd.s32 %s78, 1
    %s80 = scalar_select %p77, %s78, %s79
    %p83 = pneg %p77
    %p84 = scmp.eq.s32.totalorder %s18, 3
    %p85 = por %p83, %p84
    %p86 = scmp.ne.s32.totalorder %s78, %s81
    %p87 = scmp.eq.s32.totalorder %s18, 0
    %p88 = por %p86, %p87
    %p89 = scmp.ne.s32.totalorder %s78, %s81
    %p90 = scmp.eq.s32.totalorder %s23, 3
    %p91 = por %p89, %p90
    %p92 = scmp.ne.s32.totalorder %s81, %s82
    %p93 = scmp.eq.s32.totalorder %s23, 0
    %p94 = por %p92, %p93
    %p95 = scmp.ne.s32.totalorder %s81, %s82
    %p96 = scmp.eq.s32.totalorder %s24, 3
    %p97 = por %p95, %p96
    %p99 = scmp.ne.s32.totalorder %s82, %s98
    %p100 = scmp.eq.s32.totalorder %s24, 0
    %p101 = por %p99, %p100
    %s102 = smul.u32 %s26, 8
    %s103 = sadd.s32 %s102, 8
    %p104 = scmp.lt.s32.totalorder %s103, 15
    %s105 = scalar_select %p104, %s103, 15
    %s106 = smul.u32 %s33, 8
    %s107 = sadd.s32 %s106, 8
    %p108 = scmp.lt.s32.totalorder %s107, 15
    %s109 = scalar_select %p108, %s107, 15
    %s110 = ssub.s32 %s25, %s37
    %s111 = ssub.s32 %s105, %s109
    %s112 = sor.u32 %s110, %s111
    %p113 = scmp.eq.s32.totalorder %s112, 0
    %s115 = sadd.s32 %s114, 1
    %s116 = scalar_select %p113, %s114, %s115
    %p119 = pneg %p113
    %p120 = scmp.eq.s32.totalorder %s18, 3
    %p121 = por %p119, %p120
    %p122 = scmp.ne.s32.totalorder %s114, %s117
    %p123 = scmp.eq.s32.totalorder %s18, 0
    %p124 = por %p122, %p123
    %p125 = scmp.ne.s32.totalorder %s114, %s117
    %p126 = scmp.eq.s32.totalorder %s23, 3
    %p127 = por %p125, %p126
    %p128 = scmp.ne.s32.totalorder %s117, %s118
    %p129 = scmp.eq.s32.totalorder %s23, 0
    %p130 = por %p128, %p129
    %p131 = scmp.ne.s32.totalorder %s117, %s118
    %p132 = scmp.eq.s32.totalorder %s24, 3
    %p133 = por %p131, %p132
    %p135 = scmp.ne.s32.totalorder %s118, %s134
    %p136 = scmp.eq.s32.totalorder %s24, 0
    %p137 = por %p135, %p136
    %s139 = sadd.s32 %s138, 1
    %p142 = scmp.eq.s32.totalorder %s18, 3
    %p143 = scmp.ne.s32.totalorder %s138, %s140
    %p144 = scmp.eq.s32.totalorder %s18, 0
    %p145 = por %p143, %p144
    %p146 = scmp.ne.s32.totalorder %s138, %s140
    %p147 = scmp.eq.s32.totalorder %s23, 3
    %p148 = por %p146, %p147
    %p149 = scmp.ne.s32.totalorder %s140, %s141
    %p150 = scmp.eq.s32.totalorder %s23, 0
    %p151 = por %p149, %p150
    %p152 = scmp.ne.s32.totalorder %s140, %s141
    %p153 = scmp.eq.s32.totalorder %s24, 3
    %p154 = por %p152, %p153
    %p156 = scmp.ne.s32.totalorder %s141, %s155
    %p157 = scmp.eq.s32.totalorder %s24, 0
    %p158 = por %p156, %p157
    %s160 = sadd.s32 %s159, 1
    %p163 = scmp.eq.s32.totalorder %s18, 3
    %p164 = scmp.ne.s32.totalorder %s159, %s161
    %p165 = scmp.eq.s32.totalorder %s18, 0
    %p166 = por %p164, %p165
    %p167 = scmp.ne.s32.totalorder %s159, %s161
    %p168 = scmp.eq.s32.totalorder %s23, 3
    %p169 = por %p167, %p168
    %p170 = scmp.ne.s32.totalorder %s161, %s162
    %p171 = scmp.eq.s32.totalorder %s23, 0
    %p172 = por %p170, %p171
    %p173 = scmp.ne.s32.totalorder %s161, %s162
    %p174 = scmp.eq.s32.totalorder %s24, 3
    %p175 = por %p173, %p174
    %p177 = scmp.ne.s32.totalorder %s162, %s176
    %p178 = scmp.eq.s32.totalorder %s24, 0
    %p179 = por %p177, %p178
    %s181 = sadd.s32 %s180, 1
    %p184 = scmp.eq.s32.totalorder %s18, 3
    %p185 = scmp.ne.s32.totalorder %s180, %s182
    %p186 = scmp.eq.s32.totalorder %s18, 0
    %p187 = por %p185, %p186
    %p188 = scmp.ne.s32.totalorder %s180, %s182
    %p189 = scmp.eq.s32.totalorder %s23, 3
    %p190 = por %p188, %p189
    %p191 = scmp.ne.s32.totalorder %s182, %s183
    %p192 = scmp.eq.s32.totalorder %s23, 0
    %p193 = por %p191, %p192
    %p194 = scmp.ne.s32.totalorder %s182, %s183
    %p195 = scmp.eq.s32.totalorder %s24, 3
    %p196 = por %p194, %p195
    %p198 = scmp.ne.s32.totalorder %s183, %s197
    %p199 = scmp.eq.s32.totalorder %s24, 0
    %p200 = por %p198, %p199
    %s202 = sadd.s32 %s201, 1
    %p205 = scmp.eq.s32.totalorder %s18, 3
    %p206 = scmp.ne.s32.totalorder %s201, %s203
    %p207 = scmp.eq.s32.totalorder %s18, 0
    %p208 = por %p206, %p207
    %p209 = scmp.ne.s32.totalorder %s201, %s203
    %p210 = scmp.eq.s32.totalorder %s23, 3
    %p211 = por %p209, %p210
    %p212 = scmp.ne.s32.totalorder %s203, %s204
    %p213 = scmp.eq.s32.totalorder %s23, 0
    %p214 = por %p212, %p213
    %p215 = scmp.ne.s32.totalorder %s203, %s204
    %p216 = scmp.eq.s32.totalorder %s24, 3
    %p217 = por %p215, %p216
    %p219 = scmp.ne.s32.totalorder %s204, %s218
    %p220 = scmp.eq.s32.totalorder %s24, 0
    %p221 = por %p219, %p220
    %s223 = sadd.s32 %s222, 1
    %p226 = scmp.eq.s32.totalorder %s18, 3
    %p227 = scmp.ne.s32.totalorder %s222, %s224
    %p228 = scmp.eq.s32.totalorder %s18, 0
    %p229 = por %p227, %p228
    %p230 = scmp.ne.s32.totalorder %s222, %s224
    %p231 = scmp.eq.s32.totalorder %s23, 3
    %p232 = por %p230, %p231
    %p233 = scmp.ne.s32.totalorder %s224, %s225
    %p234 = scmp.eq.s32.totalorder %s23, 0
    %p235 = por %p233, %p234
    %p236 = scmp.ne.s32.totalorder %s224, %s225
    %p237 = scmp.eq.s32.totalorder %s24, 3
    %p238 = por %p236, %p237
    %p240 = scmp.ne.s32.totalorder %s225, %s239
    %p241 = scmp.eq.s32.totalorder %s24, 0
    %p242 = por %p240, %p241
    %s244 = sadd.s32 %s243, 1
    %p247 = scmp.eq.s32.totalorder %s18, 3
    %p248 = scmp.ne.s32.totalorder %s243, %s245
    %p249 = scmp.eq.s32.totalorder %s18, 0
    %p250 = por %p248, %p249
    %p251 = scmp.ne.s32.totalorder %s243, %s245
    %p252 = scmp.eq.s32.totalorder %s23, 3
    %p253 = por %p251, %p252
    %p254 = scmp.ne.s32.totalorder %s245, %s246
    %p255 = scmp.eq.s32.totalorder %s23, 0
    %p256 = por %p254, %p255
    %p257 = scmp.ne.s32.totalorder %s245, %s246
    %p258 = scmp.eq.s32.totalorder %s24, 3
    %p259 = por %p257, %p258
    %p261 = scmp.ne.s32.totalorder %s246, %s260
    %p262 = scmp.eq.s32.totalorder %s24, 0
    %p263 = por %p261, %p262
    %s265 = sadd.s32 %s264, 1
    %p268 = scmp.eq.s32.totalorder %s18, 3
    %p269 = scmp.ne.s32.totalorder %s264, %s266
    %p270 = scmp.eq.s32.totalorder %s18, 0
    %p271 = por %p269, %p270
    %p272 = scmp.ne.s32.totalorder %s264, %s266
    %p273 = scmp.eq.s32.totalorder %s23, 3
    %p274 = por %p272, %p273
    %p275 = scmp.ne.s32.totalorder %s266, %s267
    %p276 = scmp.eq.s32.totalorder %s23, 0
    %p277 = por %p275, %p276
    %p278 = scmp.ne.s32.totalorder %s266, %s267
    %p279 = scmp.eq.s32.totalorder %s24, 3
    %p280 = por %p278, %p279
    %p282 = scmp.ne.s32.totalorder %s267, %s281
    %p283 = scmp.eq.s32.totalorder %s24, 0
    %p284 = por %p282, %p283
    %s286 = sadd.s32 %s285, 1
    %p289 = scmp.eq.s32.totalorder %s18, 3
    %p290 = scmp.ne.s32.totalorder %s285, %s287
    %p291 = scmp.eq.s32.totalorder %s18, 0
    %p292 = por %p290, %p291
    %p293 = scmp.ne.s32.totalorder %s285, %s287
    %p294 = scmp.eq.s32.totalorder %s23, 3
    %p295 = por %p293, %p294
    %p296 = scmp.ne.s32.totalorder %s287, %s288
    %p297 = scmp.eq.s32.totalorder %s23, 0
    %p298 = por %p296, %p297
    %p299 = scmp.ne.s32.totalorder %s287, %s288
    %p300 = scmp.eq.s32.totalorder %s24, 3
    %p301 = por %p299, %p300
    %p303 = scmp.ne.s32.totalorder %s288, %s302
    %p304 = scmp.eq.s32.totalorder %s24, 0
    %p305 = por %p303, %p304
    %s307 = sadd.s32 %s306, 1
    %p310 = scmp.eq.s32.totalorder %s18, 3
    %p311 = scmp.ne.s32.totalorder %s306, %s308
    %p312 = scmp.eq.s32.totalorder %s18, 0
    %p313 = por %p311, %p312
    %p314 = scmp.ne.s32.totalorder %s306, %s308
    %p315 = scmp.eq.s32.totalorder %s23, 3
    %p316 = por %p314, %p315
    %p317 = scmp.ne.s32.totalorder %s308, %s309
    %p318 = scmp.eq.s32.totalorder %s23, 0
    %p319 = por %p317, %p318
    %p320 = scmp.ne.s32.totalorder %s308, %s309
    %p321 = scmp.eq.s32.totalorder %s24, 3
    %p322 = por %p320, %p321
    %p324 = scmp.ne.s32.totalorder %s309, %s323
    %p325 = scmp.eq.s32.totalorder %s24, 0
    %p326 = por %p324, %p325
    %s327 = ssub.s32 %s25, %s37
    %s328 = ssub.s32 %s26, %s33
    %s329 = sor.u32 %s327, %s328
    %p330 = scmp.eq.s32.totalorder %s329, 0
    %s332 = sadd.s32 %s331, 1
    %s333 = scalar_select %p330, %s331, %s332
    %p336 = pneg %p330
    %p337 = scmp.eq.s32.totalorder %s18, 3
    %p338 = por %p336, %p337
    %p339 = scmp.ne.s32.totalorder %s331, %s334
    %p340 = scmp.eq.s32.totalorder %s18, 0
    %p341 = por %p339, %p340
    %p342 = scmp.ne.s32.totalorder %s331, %s334
    %p343 = scmp.eq.s32.totalorder %s23, 3
    %p344 = por %p342, %p343
    %p345 = scmp.ne.s32.totalorder %s334, %s335
    %p346 = scmp.eq.s32.totalorder %s23, 0
    %p347 = por %p345, %p346
    %p348 = scmp.ne.s32.totalorder %s334, %s335
    %p349 = scmp.eq.s32.totalorder %s24, 3
    %p350 = por %p348, %p349
    %p352 = scmp.ne.s32.totalorder %s335, %s351
    %p353 = scmp.eq.s32.totalorder %s24, 0
    %p354 = por %p352, %p353
    %p355 = scmp.le.s32.totalorder 1, %s18
    %p356 = scmp.lt.s32.totalorder %s18, 5
    %p357 = pnand %p355, %p356
    %p358 = pneg %p357
    // Predicated region
    $region9: #{csp_layer.1} parent=5 // pred_check
      _
    $region10: #{csp_layer.1} parent=5 // pred_check_branch
      %360 = sbr.rel (%p357) target = $region12
    $region11: #{csp_layer.1} parent=5 // pred_region
      %s361 = ssub.s32 %s18, 1
      // Predicated region
      $region13: #{csp_layer.1} parent=11 // pred_check
        %p362 = pneg %p151
      $region14: #{csp_layer.1} parent=11 // pred_check_branch
        %364 = sbr.rel (%p362) target = $region16
      $region15: #{csp_layer.1} parent=11 // pred_region
        _
      $region16: #{csp_layer.1} parent=11 // pred_fallthru
        _
      // Predicated region
      $region17: #{csp_layer.1} parent=11 // pred_check
        %p365 = pneg %p172
      $region18: #{csp_layer.1} parent=11 // pred_check_branch
        %367 = sbr.rel (%p365) target = $region20
      $region19: #{csp_layer.1} parent=11 // pred_region
        _
      $region20: #{csp_layer.1} parent=11 // pred_fallthru
        _
      // Predicated region
      $region21: #{csp_layer.1} parent=11 // pred_check
        %p368 = pneg %p193
      $region22: #{csp_layer.1} parent=11 // pred_check_branch
        %370 = sbr.rel (%p368) target = $region24
      $region23: #{csp_layer.1} parent=11 // pred_region
        _
      $region24: #{csp_layer.1} parent=11 // pred_fallthru
        _
      // Predicated region
      $region25: #{csp_layer.1} parent=11 // pred_check
        %p371 = pneg %p214
      $region26: #{csp_layer.1} parent=11 // pred_check_branch
        %373 = sbr.rel (%p371) target = $region28
      $region27: #{csp_layer.1} parent=11 // pred_region
        _
      $region28: #{csp_layer.1} parent=11 // pred_fallthru
        _
      // Predicated region
      $region29: #{csp_layer.1} parent=11 // pred_check
        %p374 = pneg %p235
      $region30: #{csp_layer.1} parent=11 // pred_check_branch
        %376 = sbr.rel (%p374) target = $region32
      $region31: #{csp_layer.1} parent=11 // pred_region
        _
      $region32: #{csp_layer.1} parent=11 // pred_fallthru
        _
      // Predicated region
      $region33: #{csp_layer.1} parent=11 // pred_check
        %p377 = pneg %p256
      $region34: #{csp_layer.1} parent=11 // pred_check_branch
        %379 = sbr.rel (%p377) target = $region36
      $region35: #{csp_layer.1} parent=11 // pred_region
        _
      $region36: #{csp_layer.1} parent=11 // pred_fallthru
        _
      // Predicated region
      $region37: #{csp_layer.1} parent=11 // pred_check
        %p380 = pneg %p277
      $region38: #{csp_layer.1} parent=11 // pred_check_branch
        %382 = sbr.rel (%p380) target = $region40
      $region39: #{csp_layer.1} parent=11 // pred_region
        _
      $region40: #{csp_layer.1} parent=11 // pred_fallthru
        _
      // Predicated region
      $region41: #{csp_layer.1} parent=11 // pred_check
        %p383 = pneg %p298
      $region42: #{csp_layer.1} parent=11 // pred_check_branch
        %385 = sbr.rel (%p383) target = $region44
      $region43: #{csp_layer.1} parent=11 // pred_region
        _
      $region44: #{csp_layer.1} parent=11 // pred_fallthru
        _
      // Predicated region
      $region45: #{csp_layer.1} parent=11 // pred_check
        %p386 = pneg %p319
      $region46: #{csp_layer.1} parent=11 // pred_check_branch
        %388 = sbr.rel (%p386) target = $region48
      $region47: #{csp_layer.1} parent=11 // pred_region
        _
      $region48: #{csp_layer.1} parent=11 // pred_fallthru
        _
    $region12: #{csp_layer.1} parent=5 // pred_fallthru
      _
    %p389 = scmp.lt.s32.totalorder %s18, 4
    // Predicated region
    $region49: #{csp_layer.1} parent=5 // pred_check
      %p390 = pneg %p389
    $region50: #{csp_layer.1} parent=5 // pred_check_branch
      %392 = sbr.rel (%p390) target = $region52
    $region51: #{csp_layer.1} parent=5 // pred_region
      // Predicated region
      $region53: #{csp_layer.1} parent=51 // pred_check
        %p393 = pneg %p52
      $region54: #{csp_layer.1} parent=51 // pred_check_branch
        %395 = sbr.rel (%p393) target = $region56
      $region55: #{csp_layer.1} parent=51 // pred_region
        %s396 = smul.u32 8, %s26
        %p397 = scmp.lt.s32.totalorder %s25, 1
        %s398 = scalar_select %p397, %s25, 1
        %p399 = scmp.lt.s32.totalorder %s396, 15
        %s400 = scalar_select %p399, %s396, 15
        %s401 = smul.addr %s400, 2
        %s402 = smul.addr %s398, 32
        %s403 = sadd.s32 %s401, %s402
        %s404 = smul.addr %s403, 4
        %s405 = scalar_lea.vmem %s0, %s404
        %s406 = smul.u32 8, %s26
      $region56: #{csp_layer.1} parent=51 // pred_fallthru
        _
      // Predicated region
      $region57: #{csp_layer.1} parent=51 // pred_check
        %p407 = pneg %p88
      $region58: #{csp_layer.1} parent=51 // pred_check_branch
        %409 = sbr.rel (%p407) target = $region60
      $region59: #{csp_layer.1} parent=51 // pred_region
        %s410 = smul.u32 %s26, 8
        %s411 = ssub.s32 %s410, 1
        %p412 = scmp.gt.s32.totalorder %s411, 0
        %s413 = scalar_select %p412, %s411, 0
        %p414 = scmp.lt.s32.totalorder %s25, 1
        %s415 = scalar_select %p414, %s25, 1
        %p416 = scmp.lt.s32.totalorder %s413, 15
        %s417 = scalar_select %p416, %s413, 15
        %s418 = smul.addr %s417, 2
        %s419 = smul.addr %s415, 32
        %s420 = sadd.s32 %s418, %s419
        %s421 = smul.addr %s420, 4
        %s422 = scalar_lea.vmem %s1, %s421
        %s423 = smul.u32 %s26, 8
        %s424 = ssub.s32 %s423, 1
        %p425 = scmp.gt.s32.totalorder %s424, 0
        %s426 = scalar_select %p425, %s424, 0
      $region60: #{csp_layer.1} parent=51 // pred_fallthru
        _
      // Predicated region
      $region61: #{csp_layer.1} parent=51 // pred_check
        %p427 = pneg %p124
      $region62: #{csp_layer.1} parent=51 // pred_check_branch
        %429 = sbr.rel (%p427) target = $region64
      $region63: #{csp_layer.1} parent=51 // pred_region
        %s430 = smul.u32 %s26, 8
        %s431 = sadd.s32 %s430, 8
        %p432 = scmp.lt.s32.totalorder %s431, 15
        %s433 = scalar_select %p432, %s431, 15
        %p434 = scmp.lt.s32.totalorder %s25, 1
        %s435 = scalar_select %p434, %s25, 1
        %p436 = scmp.lt.s32.totalorder %s433, 15
        %s437 = scalar_select %p436, %s433, 15
        %s438 = smul.addr %s437, 2
        %s439 = smul.addr %s435, 32
        %s440 = sadd.s32 %s438, %s439
        %s441 = smul.addr %s440, 4
        %s442 = scalar_lea.vmem %s2, %s441
        %s443 = smul.u32 %s26, 8
        %s444 = sadd.s32 %s443, 8
        %p445 = scmp.lt.s32.totalorder %s444, 15
        %s446 = scalar_select %p445, %s444, 15
      $region64: #{csp_layer.1} parent=51 // pred_fallthru
        _
    $region52: #{csp_layer.1} parent=5 // pred_fallthru
      _
    %p447 = scmp.le.s32.totalorder 1, %s18
    %p448 = scmp.lt.s32.totalorder %s18, 5
    %p449 = pnand %p447, %p448
    %p450 = pneg %p449
    // Predicated region
    $region65: #{csp_layer.1} parent=5 // pred_check
      _
    $region66: #{csp_layer.1} parent=5 // pred_check_branch
      %452 = sbr.rel (%p449) target = $region68
    $region67: #{csp_layer.1} parent=5 // pred_region
      %s453 = ssub.s32 %s18, 1
      %s454 = smul.u32 8, %s28
      %p455 = scmp.lt.s32.totalorder %s27, 1
      %s456 = scalar_select %p455, %s27, 1
      %p457 = scmp.lt.s32.totalorder %s454, 15
      %s458 = scalar_select %p457, %s454, 15
      %s459 = smul.addr %s458, 2
      %s460 = smul.addr %s456, 32
      %s461 = sadd.s32 %s459, %s460
      %s462 = smul.addr %s461, 4
      %s463 = scalar_lea.vmem %s0, %s462
      %p464 = pneg %p58
      %p465 = pneg %p55
      %s466 = smul.u32 %s28, 8
      %s467 = ssub.s32 %s466, 1
      %p468 = scmp.gt.s32.totalorder %s467, 0
      %s469 = scalar_select %p468, %s467, 0
      %p470 = scmp.lt.s32.totalorder %s27, 1
      %s471 = scalar_select %p470, %s27, 1
      %p472 = scmp.lt.s32.totalorder %s469, 15
      %s473 = scalar_select %p472, %s469, 15
      %s474 = smul.addr %s473, 2
      %s475 = smul.addr %s471, 32
      %s476 = sadd.s32 %s474, %s475
      %s477 = smul.addr %s476, 4
      %s478 = scalar_lea.vmem %s1, %s477
      %p479 = pneg %p94
      %p480 = pneg %p91
      %s481 = smul.u32 %s28, 8
      %s482 = sadd.s32 %s481, 8
      %p483 = scmp.lt.s32.totalorder %s482, 15
      %s484 = scalar_select %p483, %s482, 15
      %p485 = scmp.lt.s32.totalorder %s27, 1
      %s486 = scalar_select %p485, %s27, 1
      %p487 = scmp.lt.s32.totalorder %s484, 15
      %s488 = scalar_select %p487, %s484, 15
      %s489 = smul.addr %s488, 2
      %s490 = smul.addr %s486, 32
      %s491 = sadd.s32 %s489, %s490
      %s492 = smul.addr %s491, 4
      %s493 = scalar_lea.vmem %s2, %s492
      %p494 = pneg %p130
      %p495 = pneg %p127
      %p496 = pneg %p151
      %p497 = pneg %p148
      %p498 = pneg %p172
      %p499 = pneg %p169
      %p500 = pneg %p193
      %p501 = pneg %p190
      %p502 = pneg %p214
      %p503 = pneg %p211
      %p504 = pneg %p235
      %p505 = pneg %p232
      %p506 = pneg %p256
      %p507 = pneg %p253
      %p508 = pneg %p277
      %p509 = pneg %p274
      %p510 = pneg %p298
      %p511 = pneg %p295
      %p512 = pneg %p319
      %p513 = pneg %p316
      %p514 = pneg %p347
      %p515 = pneg %p344
      %s516 = smul.u32 8, %s28
      %p517 = scmp.lt.s32.totalorder %s27, 1
      %s518 = scalar_select %p517, %s27, 1
      %p519 = scmp.lt.s32.totalorder %s516, 15
      %s520 = scalar_select %p519, %s516, 15
      %s521 = smul.addr %s520, 2
      %s522 = smul.addr %s518, 32
      %s523 = sadd.s32 %s521, %s522
      %s524 = smul.addr %s523, 4
      %s525 = scalar_lea.vmem %s12, %s524
      %s526 = smul.u32 8, %s28
      %p527 = scmp.lt.s32.totalorder %s27, 1
      %s528 = scalar_select %p527, %s27, 1
      %p529 = scmp.lt.s32.totalorder %s526, 15
      %s530 = scalar_select %p529, %s526, 15
      %s531 = smul.addr %s530, 2
      %s532 = smul.addr %s528, 32
      %s533 = sadd.s32 %s531, %s532
      %s534 = smul.addr %s533, 4
      %s535 = scalar_lea.vmem %s0, %s534
      %s536 = smul.u32 8, %s28
      %s537 = smul.u32 %s28, 8
      %s538 = ssub.s32 %s537, 1
      %p539 = scmp.gt.s32.totalorder %s538, 0
      %s540 = scalar_select %p539, %s538, 0
      %p541 = scmp.lt.s32.totalorder %s27, 1
      %s542 = scalar_select %p541, %s27, 1
      %p543 = scmp.lt.s32.totalorder %s540, 15
      %s544 = scalar_select %p543, %s540, 15
      %s545 = smul.addr %s544, 2
      %s546 = smul.addr %s542, 32
      %s547 = sadd.s32 %s545, %s546
      %s548 = smul.addr %s547, 4
      %s549 = scalar_lea.vmem %s1, %s548
      %s550 = smul.u32 %s28, 8
      %s551 = ssub.s32 %s550, 1
      %p552 = scmp.gt.s32.totalorder %s551, 0
      %s553 = scalar_select %p552, %s551, 0
      %s554 = smul.u32 %s28, 8
      %s555 = sadd.s32 %s554, 8
      %p556 = scmp.lt.s32.totalorder %s555, 15
      %s557 = scalar_select %p556, %s555, 15
      %p558 = scmp.lt.s32.totalorder %s27, 1
      %s559 = scalar_select %p558, %s27, 1
      %p560 = scmp.lt.s32.totalorder %s557, 15
      %s561 = scalar_select %p560, %s557, 15
      %s562 = smul.addr %s561, 2
      %s563 = smul.addr %s559, 32
      %s564 = sadd.s32 %s562, %s563
      %s565 = smul.addr %s564, 4
      %s566 = scalar_lea.vmem %s2, %s565
      %s567 = smul.u32 %s28, 8
      %s568 = sadd.s32 %s567, 8
      %p569 = scmp.lt.s32.totalorder %s568, 15
      %s570 = scalar_select %p569, %s568, 15
      %s571 = smul.u32 8, %s28
      %p572 = scmp.lt.s32.totalorder %s27, 1
      %s573 = scalar_select %p572, %s27, 1
      %p574 = scmp.lt.s32.totalorder %s571, 15
      %s575 = scalar_select %p574, %s571, 15
      %s576 = smul.addr %s575, 2
      %s577 = smul.addr %s573, 32
      %s578 = sadd.s32 %s576, %s577
      %s579 = smul.addr %s578, 4
      %s580 = scalar_lea.vmem %s12, %s579
      %s581 = smul.u32 8, %s28
      %v583 = vld [vmem:[%s549] sm:$0xf]
      %v584 = vld [vmem:[%s549 + $0x4] sm:$0xf]
      %v585 = vld [vmem:[%s535] sm:$0xf]
      %v586 = vld [vmem:[%s535 + $0x4] sm:$0xf]
      %v587 = vld [vmem:[%s535 + $0x8] sm:$0xf]
      %v588 = vld [vmem:[%s535 + $0xc] sm:$0xf]
      %v589 = vld [vmem:[%s535 + $0x10] sm:$0xf]
      %v590 = vld [vmem:[%s535 + $0x14] sm:$0xf]
      %v591 = vld [vmem:[%s535 + $0x18] sm:$0xf]
      %v592 = vld [vmem:[%s535 + $0x1c] sm:$0xf]
      %v593 = vld [vmem:[%s535 + $0x20] sm:$0xf]
      %v594 = vld [vmem:[%s535 + $0x24] sm:$0xf]
      %v595 = vld [vmem:[%s535 + $0x28] sm:$0xf]
      %v596 = vld [vmem:[%s535 + $0x2c] sm:$0xf]
      %v597 = vld [vmem:[%s535 + $0x30] sm:$0xf]
      %v598 = vld [vmem:[%s535 + $0x34] sm:$0xf]
      %v599 = vld [vmem:[%s535 + $0x38] sm:$0xf]
      %v600 = vld [vmem:[%s535 + $0x3c] sm:$0xf]
      %v601 = vld [vmem:[%s566] sm:$0xf]
      %v602 = vld [vmem:[%s566 + $0x4] sm:$0xf]
      %v603 = vld [vmem:[%s3] sm:$0x3]
      %v604 = vld [vmem:[%s4] sm:$0x1]
      %v606 = vlaneseq
      %v607 = vshrl.u32 %v606, 7
      %v608 = vsub.s32 0, %v607
      %v609 = vrot.slane %v604, %v608
      %v631 = vunpack.c.l.b16 %v583
      %v632 = vunpack.c.l.b16 %v584
      %v633 = vunpack.c.l.b16 %v585
      %v634 = vunpack.c.l.b16 %v586
      %v635 = vunpack.c.l.b16 %v587
      %v636 = vunpack.c.l.b16 %v588
      %v637 = vunpack.c.l.b16 %v589
      %v638 = vunpack.c.l.b16 %v590
      %v639 = vunpack.c.l.b16 %v591
      %v640 = vunpack.c.l.b16 %v592
      %v641 = vunpack.c.l.b16 %v593
      %v642 = vunpack.c.l.b16 %v594
      %v643 = vunpack.c.l.b16 %v595
      %v644 = vunpack.c.l.b16 %v596
      %v645 = vunpack.c.l.b16 %v597
      %v646 = vunpack.c.l.b16 %v598
      %v647 = vunpack.c.l.b16 %v599
      %v648 = vunpack.c.l.b16 %v600
      %v649 = vunpack.c.l.b16 %v601
      %v650 = vunpack.c.l.b16 %v602
      %v651 = vpack.c.b16 %v632, %v631
      %v652 = vpack.c.b16 %v634, %v633
      %v653 = vpack.c.b16 %v636, %v635
      %v654 = vpack.c.b16 %v638, %v637
      %v655 = vpack.c.b16 %v640, %v639
      %v656 = vpack.c.b16 %v642, %v641
      %v657 = vpack.c.b16 %v644, %v643
      %v658 = vpack.c.b16 %v646, %v645
      %v659 = vpack.c.b16 %v648, %v647
      %v660 = vpack.c.b16 %v650, %v649
      %vm661 = vcmask 31744
      %v663 = vsel %vm661, %v651, 0
      %v666 = vsel %vm661, %v652, 0
      %v669 = vsel %vm661, %v653, 0
      %v672 = vsel %vm661, %v654, 0
      %v675 = vsel %vm661, %v655, 0
      %v678 = vsel %vm661, %v656, 0
      %v681 = vsel %vm661, %v657, 0
      %v684 = vsel %vm661, %v658, 0
      %v687 = vsel %vm661, %v659, 0
      %v690 = vsel %vm661, %v660, 0
      %vm692 = vcmask 1041408
      %v694 = vsel %vm692, %v603, 0
      %696 = vmatprep.subr.bf16.mxu0 0
      %697 = vmatpush1.bf16.msra.mxu0 0
      %698 = vmatprep.subr.bf16.mxu0 0
      %699 = vmatpush1.bf16.msra.mxu0 0
      %700 = vmatprep.subr.bf16.mxu0 0
      %701 = vmatpush1.bf16.msra.mxu0 0
      %702 = vmatprep.subr.bf16.mxu0 0
      %703 = vmatpush1.bf16.msra.mxu0 0
      %704 = vmatprep.subr.bf16.mxu0 0
      %705 = vmatpush1.bf16.msra.mxu0 0
      %706 = vmatprep.subr.bf16.mxu0 0
      %707 = vmatpush1.bf16.msra.mxu0 0
      %708 = vmatprep.subr.bf16.mxu0 0
      %709 = vmatpush1.bf16.msra.mxu0 0
      %710 = vmatprep.subr.bf16.mxu0 0
      %711 = vmatpush1.bf16.msra.mxu0 %v694
      %712 = vmatprep.subr.bf16.mxu0 0
      %713 = vmatpush2.bf16.msra.mxu0 0
      %714 = vmatprep.subr.bf16.mxu0 0
      %715 = vmatpush2.bf16.msra.mxu0 0
      %716 = vmatprep.subr.bf16.mxu0 0
      %717 = vmatpush2.bf16.msra.mxu0 0
      %718 = vmatprep.subr.bf16.mxu0 0
      %719 = vmatpush2.bf16.msra.mxu0 0
      %720 = vmatprep.subr.bf16.mxu0 0
      %721 = vmatpush2.bf16.msra.mxu0 0
      %722 = vmatprep.subr.bf16.mxu0 0
      %723 = vmatpush2.bf16.msra.mxu0 0
      %724 = vmatprep.subr.bf16.mxu0 0
      %725 = vmatpush2.bf16.msra.mxu0 0
      %726 = vmatprep.subr.bf16.mxu0 0
      %727 = vmatpush2.bf16.msra.mxu0 0
      %728 = vmatprep.mubr.bf16.mxu0 0
      %729 = vmatmul.mubr.bf16.gmra.mxu0 %v663
      %v730 = vpop.f32.mrf.mxu0
      %v731 = vadd.f32 %v609, %v730
      %v732 = vpop.f32.mrf.mxu0
      %v733 = vpop.f32.mrf.mxu0
      %v734 = vadd.f32 %v609, %v733
      %v735 = vpop.f32.mrf.mxu0
      %736 = vmatprep.mubr.bf16.mxu0 0
      %737 = vmatmul.mubr.bf16.gmra.mxu0 %v666
      %v738 = vpop.f32.mrf.mxu0
      %v739 = vadd.f32 %v609, %v738
      %v740 = vpop.f32.mrf.mxu0
      %v741 = vpop.f32.mrf.mxu0
      %v742 = vadd.f32 %v609, %v741
      %v743 = vpop.f32.mrf.mxu0
      %744 = vmatprep.mubr.bf16.mxu0 0
      %745 = vmatmul.mubr.bf16.gmra.mxu0 %v669
      %v746 = vpop.f32.mrf.mxu0
      %v747 = vadd.f32 %v609, %v746
      %v748 = vpop.f32.mrf.mxu0
      %v749 = vpop.f32.mrf.mxu0
      %v750 = vadd.f32 %v609, %v749
      %v751 = vpop.f32.mrf.mxu0
      %752 = vmatprep.mubr.bf16.mxu0 0
      %753 = vmatmul.mubr.bf16.gmra.mxu0 %v672
      %v754 = vpop.f32.mrf.mxu0
      %v755 = vadd.f32 %v609, %v754
      %v756 = vpop.f32.mrf.mxu0
      %v757 = vpop.f32.mrf.mxu0
      %v758 = vadd.f32 %v609, %v757
      %v759 = vpop.f32.mrf.mxu0
      %760 = vmatprep.mubr.bf16.mxu0 0
      %761 = vmatmul.mubr.bf16.gmra.mxu0 %v675
      %v762 = vpop.f32.mrf.mxu0
      %v763 = vadd.f32 %v609, %v762
      %v764 = vpop.f32.mrf.mxu0
      %v765 = vpop.f32.mrf.mxu0
      %v766 = vadd.f32 %v609, %v765
      %v767 = vpop.f32.mrf.mxu0
      %768 = vmatprep.mubr.bf16.mxu0 0
      %769 = vmatmul.mubr.bf16.gmra.mxu0 %v678
      %v770 = vpop.f32.mrf.mxu0
      %v771 = vadd.f32 %v609, %v770
      %v772 = vpop.f32.mrf.mxu0
      %v773 = vpop.f32.mrf.mxu0
      %v774 = vadd.f32 %v609, %v773
      %v775 = vpop.f32.mrf.mxu0
      %776 = vmatprep.mubr.bf16.mxu0 0
      %777 = vmatmul.mubr.bf16.gmra.mxu0 %v681
      %v778 = vpop.f32.mrf.mxu0
      %v779 = vadd.f32 %v609, %v778
      %v780 = vpop.f32.mrf.mxu0
      %v781 = vpop.f32.mrf.mxu0
      %v782 = vadd.f32 %v609, %v781
      %v783 = vpop.f32.mrf.mxu0
      %784 = vmatprep.mubr.bf16.mxu0 0
      %785 = vmatmul.mubr.bf16.gmra.mxu0 %v684
      %v786 = vpop.f32.mrf.mxu0
      %v787 = vadd.f32 %v609, %v786
      %v788 = vpop.f32.mrf.mxu0
      %v789 = vpop.f32.mrf.mxu0
      %v790 = vadd.f32 %v609, %v789
      %v791 = vpop.f32.mrf.mxu0
      %792 = vmatprep.mubr.bf16.mxu0 0
      %793 = vmatmul.mubr.bf16.gmra.mxu0 %v687
      %v794 = vpop.f32.mrf.mxu0
      %v795 = vadd.f32 %v609, %v794
      %v796 = vpop.f32.mrf.mxu0
      %v797 = vpop.f32.mrf.mxu0
      %v798 = vadd.f32 %v609, %v797
      %v799 = vpop.f32.mrf.mxu0
      %800 = vmatprep.mubr.bf16.mxu0 0
      %801 = vmatmul.mubr.bf16.gmra.mxu0 %v690
      %v802 = vpop.f32.mrf.mxu0
      %v803 = vadd.f32 %v609, %v802
      %v804 = vpop.f32.mrf.mxu0
      %v805 = vpop.f32.mrf.mxu0
      %v806 = vadd.f32 %v609, %v805
      %v807 = vpop.f32.mrf.mxu0
      %808 = vdwg.mxu0
      %v809 = vmax.f32 %v731, 0.0
      %v810 = vmax.f32 %v734, 0.0
      %v811 = vmax.f32 %v739, 0.0
      %v812 = vmax.f32 %v742, 0.0
      %v813 = vmax.f32 %v747, 0.0
      %v814 = vmax.f32 %v750, 0.0
      %v815 = vmax.f32 %v755, 0.0
      %v816 = vmax.f32 %v758, 0.0
      %v817 = vmax.f32 %v763, 0.0
      %v818 = vmax.f32 %v766, 0.0
      %v819 = vmax.f32 %v771, 0.0
      %v820 = vmax.f32 %v774, 0.0
      %v821 = vmax.f32 %v779, 0.0
      %v822 = vmax.f32 %v782, 0.0
      %v823 = vmax.f32 %v787, 0.0
      %v824 = vmax.f32 %v790, 0.0
      %v825 = vmax.f32 %v795, 0.0
      %v826 = vmax.f32 %v798, 0.0
      %v827 = vmax.f32 %v803, 0.0
      %v828 = vmax.f32 %v806, 0.0
      %v829 = vpack.c.bf16 %v810, %v809
      %v830 = vpack.c.bf16 %v812, %v811
      %v831 = vpack.c.bf16 %v814, %v813
      %v832 = vpack.c.bf16 %v816, %v815
      %v833 = vpack.c.bf16 %v818, %v817
      %v834 = vpack.c.bf16 %v820, %v819
      %v835 = vpack.c.bf16 %v822, %v821
      %v836 = vpack.c.bf16 %v824, %v823
      %v837 = vpack.c.bf16 %v826, %v825
      %v838 = vpack.c.bf16 %v828, %v827
      %v839 = vld [vmem:[%s5] sm:$0x3]
      %v840 = vld [vmem:[%s6] sm:$0x1]
      %v842 = vlaneseq
      %v843 = vshrl.u32 %v842, 7
      %v844 = vsub.s32 0, %v843
      %v845 = vrot.slane %v840, %v844
      %v848 = vsel %vm661, %v829, 0
      %v851 = vsel %vm661, %v830, 0
      %v854 = vsel %vm661, %v831, 0
      %v857 = vsel %vm661, %v832, 0
      %v860 = vsel %vm661, %v833, 0
      %v863 = vsel %vm661, %v834, 0
      %v866 = vsel %vm661, %v835, 0
      %v869 = vsel %vm661, %v836, 0
      %v872 = vsel %vm661, %v837, 0
      %v875 = vsel %vm661, %v838, 0
      %v878 = vsel %vm692, %v839, 0
      %880 = vmatprep.subr.bf16.mxu0 0
      %881 = vmatpush1.bf16.msra.mxu0 0
      %882 = vmatprep.subr.bf16.mxu0 0
      %883 = vmatpush1.bf16.msra.mxu0 0
      %884 = vmatprep.subr.bf16.mxu0 0
      %885 = vmatpush1.bf16.msra.mxu0 0
      %886 = vmatprep.subr.bf16.mxu0 0
      %887 = vmatpush1.bf16.msra.mxu0 0
      %888 = vmatprep.subr.bf16.mxu0 0
      %889 = vmatpush1.bf16.msra.mxu0 0
      %890 = vmatprep.subr.bf16.mxu0 0
      %891 = vmatpush1.bf16.msra.mxu0 0
      %892 = vmatprep.subr.bf16.mxu0 0
      %893 = vmatpush1.bf16.msra.mxu0 0
      %894 = vmatprep.subr.bf16.mxu0 0
      %895 = vmatpush1.bf16.msra.mxu0 %v878
      %896 = vmatprep.subr.bf16.mxu0 0
      %897 = vmatpush2.bf16.msra.mxu0 0
      %898 = vmatprep.subr.bf16.mxu0 0
      %899 = vmatpush2.bf16.msra.mxu0 0
      %900 = vmatprep.subr.bf16.mxu0 0
      %901 = vmatpush2.bf16.msra.mxu0 0
      %902 = vmatprep.subr.bf16.mxu0 0
      %903 = vmatpush2.bf16.msra.mxu0 0
      %904 = vmatprep.subr.bf16.mxu0 0
      %905 = vmatpush2.bf16.msra.mxu0 0
      %906 = vmatprep.subr.bf16.mxu0 0
      %907 = vmatpush2.bf16.msra.mxu0 0
      %908 = vmatprep.subr.bf16.mxu0 0
      %909 = vmatpush2.bf16.msra.mxu0 0
      %910 = vmatprep.subr.bf16.mxu0 0
      %911 = vmatpush2.bf16.msra.mxu0 0
      %912 = vmatprep.mubr.bf16.mxu0 0
      %913 = vmatmul.mubr.bf16.gmra.mxu0 %v848
      %v914 = vpop.f32.mrf.mxu0
      %v915 = vadd.f32 %v845, %v914
      %v916 = vpop.f32.mrf.mxu0
      %v917 = vpop.f32.mrf.mxu0
      %v918 = vadd.f32 %v845, %v917
      %v919 = vpop.f32.mrf.mxu0
      %920 = vmatprep.mubr.bf16.mxu0 0
      %921 = vmatmul.mubr.bf16.gmra.mxu0 %v851
      %v922 = vpop.f32.mrf.mxu0
      %v923 = vadd.f32 %v845, %v922
      %v924 = vpop.f32.mrf.mxu0
      %v925 = vpop.f32.mrf.mxu0
      %v926 = vadd.f32 %v845, %v925
      %v927 = vpop.f32.mrf.mxu0
      %928 = vmatprep.mubr.bf16.mxu0 0
      %929 = vmatmul.mubr.bf16.gmra.mxu0 %v854
      %v930 = vpop.f32.mrf.mxu0
      %v931 = vadd.f32 %v845, %v930
      %v932 = vpop.f32.mrf.mxu0
      %v933 = vpop.f32.mrf.mxu0
      %v934 = vadd.f32 %v845, %v933
      %v935 = vpop.f32.mrf.mxu0
      %936 = vmatprep.mubr.bf16.mxu0 0
      %937 = vmatmul.mubr.bf16.gmra.mxu0 %v857
      %v938 = vpop.f32.mrf.mxu0
      %v939 = vadd.f32 %v845, %v938
      %v940 = vpop.f32.mrf.mxu0
      %v941 = vpop.f32.mrf.mxu0
      %v942 = vadd.f32 %v845, %v941
      %v943 = vpop.f32.mrf.mxu0
      %944 = vmatprep.mubr.bf16.mxu0 0
      %945 = vmatmul.mubr.bf16.gmra.mxu0 %v860
      %v946 = vpop.f32.mrf.mxu0
      %v947 = vadd.f32 %v845, %v946
      %v948 = vpop.f32.mrf.mxu0
      %v949 = vpop.f32.mrf.mxu0
      %v950 = vadd.f32 %v845, %v949
      %v951 = vpop.f32.mrf.mxu0
      %952 = vmatprep.mubr.bf16.mxu0 0
      %953 = vmatmul.mubr.bf16.gmra.mxu0 %v863
      %v954 = vpop.f32.mrf.mxu0
      %v955 = vadd.f32 %v845, %v954
      %v956 = vpop.f32.mrf.mxu0
      %v957 = vpop.f32.mrf.mxu0
      %v958 = vadd.f32 %v845, %v957
      %v959 = vpop.f32.mrf.mxu0
      %960 = vmatprep.mubr.bf16.mxu0 0
      %961 = vmatmul.mubr.bf16.gmra.mxu0 %v866
      %v962 = vpop.f32.mrf.mxu0
      %v963 = vadd.f32 %v845, %v962
      %v964 = vpop.f32.mrf.mxu0
      %v965 = vpop.f32.mrf.mxu0
      %v966 = vadd.f32 %v845, %v965
      %v967 = vpop.f32.mrf.mxu0
      %968 = vmatprep.mubr.bf16.mxu0 0
      %969 = vmatmul.mubr.bf16.gmra.mxu0 %v869
      %v970 = vpop.f32.mrf.mxu0
      %v971 = vadd.f32 %v845, %v970
      %v972 = vpop.f32.mrf.mxu0
      %v973 = vpop.f32.mrf.mxu0
      %v974 = vadd.f32 %v845, %v973
      %v975 = vpop.f32.mrf.mxu0
      %976 = vmatprep.mubr.bf16.mxu0 0
      %977 = vmatmul.mubr.bf16.gmra.mxu0 %v872
      %v978 = vpop.f32.mrf.mxu0
      %v979 = vadd.f32 %v845, %v978
      %v980 = vpop.f32.mrf.mxu0
      %v981 = vpop.f32.mrf.mxu0
      %v982 = vadd.f32 %v845, %v981
      %v983 = vpop.f32.mrf.mxu0
      %984 = vmatprep.mubr.bf16.mxu0 0
      %985 = vmatmul.mubr.bf16.gmra.mxu0 %v875
      %v986 = vpop.f32.mrf.mxu0
      %v987 = vadd.f32 %v845, %v986
      %v988 = vpop.f32.mrf.mxu0
      %v989 = vpop.f32.mrf.mxu0
      %v990 = vadd.f32 %v845, %v989
      %v991 = vpop.f32.mrf.mxu0
      %992 = vdwg.mxu0
      %v993 = vmax.f32 %v915, 0.0
      %v994 = vmax.f32 %v918, 0.0
      %v995 = vmax.f32 %v923, 0.0
      %v996 = vmax.f32 %v926, 0.0
      %v997 = vmax.f32 %v931, 0.0
      %v998 = vmax.f32 %v934, 0.0
      %v999 = vmax.f32 %v939, 0.0
      %v1000 = vmax.f32 %v942, 0.0
      %v1001 = vmax.f32 %v947, 0.0
      %v1002 = vmax.f32 %v950, 0.0
      %v1003 = vmax.f32 %v955, 0.0
      %v1004 = vmax.f32 %v958, 0.0
      %v1005 = vmax.f32 %v963, 0.0
      %v1006 = vmax.f32 %v966, 0.0
      %v1007 = vmax.f32 %v971, 0.0
      %v1008 = vmax.f32 %v974, 0.0
      %v1009 = vmax.f32 %v979, 0.0
      %v1010 = vmax.f32 %v982, 0.0
      %v1011 = vmax.f32 %v987, 0.0
      %v1012 = vmax.f32 %v990, 0.0
      %s1013 = smul.u32 %s28, 8
      %v1014 = vstv %s1013
      %v1015 = vadd.s32 %v1014, 2
      %v1016 = vadd.s32 %v1014, 3
      %v1017 = vadd.s32 %v1014, 4
      %v1018 = vadd.s32 %v1014, 5
      %v1019 = vadd.s32 %v1014, 6
      %v1020 = vadd.s32 %v1014, 7
      %v1021 = vadd.s32 %v1014, 8
      %v1022 = vadd.s32 %v1014, 9
      %v1023 = vsub.s32 %v1014, 1
      %v1024 = vsub.s32 %v1015, 1
      %v1025 = vsub.s32 %v1016, 1
      %v1026 = vsub.s32 %v1017, 1
      %v1027 = vsub.s32 %v1018, 1
      %v1028 = vsub.s32 %v1019, 1
      %v1029 = vsub.s32 %v1020, 1
      %v1030 = vsub.s32 %v1021, 1
      %v1031 = vsub.s32 %v1022, 1
      %vm1032 = vcmp.ge.s32.totalorder %v1023, 0
      %vm1033 = vcmp.ge.s32.totalorder %v1014, 0
      %vm1034 = vcmp.ge.s32.totalorder %v1024, 0
      %vm1035 = vcmp.ge.s32.totalorder %v1025, 0
      %vm1036 = vcmp.ge.s32.totalorder %v1026, 0
      %vm1037 = vcmp.ge.s32.totalorder %v1027, 0
      %vm1038 = vcmp.ge.s32.totalorder %v1028, 0
      %vm1039 = vcmp.ge.s32.totalorder %v1029, 0
      %vm1040 = vcmp.ge.s32.totalorder %v1030, 0
      %vm1041 = vcmp.ge.s32.totalorder %v1031, 0
      %vm1042 = vcmp.lt.s32.totalorder %v1023, 16
      %vm1043 = vcmp.lt.s32.totalorder %v1014, 16
      %vm1044 = vcmp.lt.s32.totalorder %v1024, 16
      %vm1045 = vcmp.lt.s32.totalorder %v1025, 16
      %vm1046 = vcmp.lt.s32.totalorder %v1026, 16
      %vm1047 = vcmp.lt.s32.totalorder %v1027, 16
      %vm1048 = vcmp.lt.s32.totalorder %v1028, 16
      %vm1049 = vcmp.lt.s32.totalorder %v1029, 16
      %vm1050 = vcmp.lt.s32.totalorder %v1030, 16
      %vm1051 = vcmp.lt.s32.totalorder %v1031, 16
      %vm1052 = vmand %vm1032, %vm1042
      %vm1053 = vmand %vm1033, %vm1043
      %vm1054 = vmand %vm1034, %vm1044
      %vm1055 = vmand %vm1035, %vm1045
      %vm1056 = vmand %vm1036, %vm1046
      %vm1057 = vmand %vm1037, %vm1047
      %vm1058 = vmand %vm1038, %vm1048
      %vm1059 = vmand %vm1039, %vm1049
      %vm1060 = vmand %vm1040, %vm1050
      %vm1061 = vmand %vm1041, %vm1051
      %v1062 = vsel %vm1052, 1, 0
      %v1063 = vsel %vm1053, 1, 0
      %v1064 = vsel %vm1054, 1, 0
      %v1065 = vsel %vm1055, 1, 0
      %v1066 = vsel %vm1056, 1, 0
      %v1067 = vsel %vm1057, 1, 0
      %v1068 = vsel %vm1058, 1, 0
      %v1069 = vsel %vm1059, 1, 0
      %v1070 = vsel %vm1060, 1, 0
      %v1071 = vsel %vm1061, 1, 0
      %vm1072 = vcmp.eq.s32.totalorder %v1062, 1
      %vm1073 = vcmp.eq.s32.totalorder %v1063, 1
      %vm1074 = vcmp.eq.s32.totalorder %v1064, 1
      %vm1075 = vcmp.eq.s32.totalorder %v1065, 1
      %vm1076 = vcmp.eq.s32.totalorder %v1066, 1
      %vm1077 = vcmp.eq.s32.totalorder %v1067, 1
      %vm1078 = vcmp.eq.s32.totalorder %v1068, 1
      %vm1079 = vcmp.eq.s32.totalorder %v1069, 1
      %vm1080 = vcmp.eq.s32.totalorder %v1070, 1
      %vm1081 = vcmp.eq.s32.totalorder %v1071, 1
      %v1082 = vsel %vm1072, %v993, 0.0
      %v1083 = vsel %vm1072, %v994, 0.0
      %v1084 = vsel %vm1073, %v995, 0.0
      %v1085 = vsel %vm1073, %v996, 0.0
      %v1086 = vsel %vm1074, %v997, 0.0
      %v1087 = vsel %vm1074, %v998, 0.0
      %v1088 = vsel %vm1075, %v999, 0.0
      %v1089 = vsel %vm1075, %v1000, 0.0
      %v1090 = vsel %vm1076, %v1001, 0.0
      %v1091 = vsel %vm1076, %v1002, 0.0
      %v1092 = vsel %vm1077, %v1003, 0.0
      %v1093 = vsel %vm1077, %v1004, 0.0
      %v1094 = vsel %vm1078, %v1005, 0.0
      %v1095 = vsel %vm1078, %v1006, 0.0
      %v1096 = vsel %vm1079, %v1007, 0.0
      %v1097 = vsel %vm1079, %v1008, 0.0
      %v1098 = vsel %vm1080, %v1009, 0.0
      %v1099 = vsel %vm1080, %v1010, 0.0
      %v1100 = vsel %vm1081, %v1011, 0.0
      %v1101 = vsel %vm1081, %v1012, 0.0
      %vm1122 = vcmask 1040384
      %v1123 = vrot.slane %v1082, 7
      %v1124 = vrot.slane %v1083, 7
      %v1125 = vsel %vm1122, %v1123, %v1124
      %v1126 = vrot.slane %v1084, 7
      %v1127 = vrot.slane %v1085, 7
      %v1128 = vsel %vm1122, %v1126, %v1127
      %v1129 = vrot.slane %v1086, 7
      %v1130 = vrot.slane %v1087, 7
      %v1131 = vsel %vm1122, %v1129, %v1130
      %v1132 = vrot.slane %v1088, 7
      %v1133 = vrot.slane %v1089, 7
      %v1134 = vsel %vm1122, %v1132, %v1133
      %v1135 = vrot.slane %v1090, 7
      %v1136 = vrot.slane %v1091, 7
      %v1137 = vsel %vm1122, %v1135, %v1136
      %v1138 = vrot.slane %v1092, 7
      %v1139 = vrot.slane %v1093, 7
      %v1140 = vsel %vm1122, %v1138, %v1139
      %v1141 = vrot.slane %v1094, 7
      %v1142 = vrot.slane %v1095, 7
      %v1143 = vsel %vm1122, %v1141, %v1142
      %v1144 = vrot.slane %v1096, 7
      %v1145 = vrot.slane %v1097, 7
      %v1146 = vsel %vm1122, %v1144, %v1145
      %v1147 = vrot.slane %v1098, 7
      %v1148 = vrot.slane %v1099, 7
      %v1149 = vsel %vm1122, %v1147, %v1148
      %v1150 = vrot.slane %v1100, 7
      %v1151 = vrot.slane %v1101, 7
      %v1152 = vsel %vm1122, %v1150, %v1151
      %v1173 = vsel %vm1122, 0.0, %v1123
      %v1174 = vsel %vm1122, 0.0, %v1126
      %v1175 = vsel %vm1122, 0.0, %v1129
      %v1176 = vsel %vm1122, 0.0, %v1132
      %v1177 = vsel %vm1122, 0.0, %v1135
      %v1178 = vsel %vm1122, 0.0, %v1138
      %v1179 = vsel %vm1122, 0.0, %v1141
      %v1180 = vsel %vm1122, 0.0, %v1144
      %v1181 = vsel %vm1122, 0.0, %v1147
      %v1182 = vsel %vm1122, 0.0, %v1150
      %vm1183 = vcmask 1046528
      %v1184 = vrot.slane %v1082, 1
      %v1185 = vrot.slane %v1083, 1
      %v1186 = vsel %vm1183, %v1184, %v1185
      %v1187 = vrot.slane %v1084, 1
      %v1188 = vrot.slane %v1085, 1
      %v1189 = vsel %vm1183, %v1187, %v1188
      %v1190 = vrot.slane %v1086, 1
      %v1191 = vrot.slane %v1087, 1
      %v1192 = vsel %vm1183, %v1190, %v1191
      %v1193 = vrot.slane %v1088, 1
      %v1194 = vrot.slane %v1089, 1
      %v1195 = vsel %vm1183, %v1193, %v1194
      %v1196 = vrot.slane %v1090, 1
      %v1197 = vrot.slane %v1091, 1
      %v1198 = vsel %vm1183, %v1196, %v1197
      %v1199 = vrot.slane %v1092, 1
      %v1200 = vrot.slane %v1093, 1
      %v1201 = vsel %vm1183, %v1199, %v1200
      %v1202 = vrot.slane %v1094, 1
      %v1203 = vrot.slane %v1095, 1
      %v1204 = vsel %vm1183, %v1202, %v1203
      %v1205 = vrot.slane %v1096, 1
      %v1206 = vrot.slane %v1097, 1
      %v1207 = vsel %vm1183, %v1205, %v1206
      %v1208 = vrot.slane %v1098, 1
      %v1209 = vrot.slane %v1099, 1
      %v1210 = vsel %vm1183, %v1208, %v1209
      %v1211 = vrot.slane %v1100, 1
      %v1212 = vrot.slane %v1101, 1
      %v1213 = vsel %vm1183, %v1211, %v1212
      %v1224 = vsel %vm1183, %v1185, 0.0
      %v1225 = vsel %vm1183, %v1188, 0.0
      %v1226 = vsel %vm1183, %v1191, 0.0
      %v1227 = vsel %vm1183, %v1194, 0.0
      %v1228 = vsel %vm1183, %v1197, 0.0
      %v1229 = vsel %vm1183, %v1200, 0.0
      %v1230 = vsel %vm1183, %v1203, 0.0
      %v1231 = vsel %vm1183, %v1206, 0.0
      %v1232 = vsel %vm1183, %v1209, 0.0
      %v1233 = vsel %vm1183, %v1212, 0.0
      %1234 = vrot.lane.b32.xlu0 %v1082, 4
      %v1235 = vpop.permute.xlu0 %1234
      %1236 = vrot.lane.b32.xlu0 %v1083, 4
      %v1237 = vpop.permute.xlu0 %1236
      %1238 = vrot.lane.b32.xlu0 %v1084, 4
      %v1239 = vpop.permute.xlu0 %1238
      %1240 = vrot.lane.b32.xlu0 %v1085, 4
      %v1241 = vpop.permute.xlu0 %1240
      %1242 = vrot.lane.b32.xlu0 %v1086, 4
      %v1243 = vpop.permute.xlu0 %1242
      %1244 = vrot.lane.b32.xlu0 %v1087, 4
      %v1245 = vpop.permute.xlu0 %1244
      %1246 = vrot.lane.b32.xlu0 %v1088, 4
      %v1247 = vpop.permute.xlu0 %1246
      %1248 = vrot.lane.b32.xlu0 %v1089, 4
      %v1249 = vpop.permute.xlu0 %1248
      %1250 = vrot.lane.b32.xlu0 %v1090, 4
      %v1251 = vpop.permute.xlu0 %1250
      %1252 = vrot.lane.b32.xlu0 %v1091, 4
      %v1253 = vpop.permute.xlu0 %1252
      %1254 = vrot.lane.b32.xlu0 %v1092, 4
      %v1255 = vpop.permute.xlu0 %1254
      %1256 = vrot.lane.b32.xlu0 %v1093, 4
      %v1257 = vpop.permute.xlu0 %1256
      %1258 = vrot.lane.b32.xlu0 %v1094, 4
      %v1259 = vpop.permute.xlu0 %1258
      %1260 = vrot.lane.b32.xlu0 %v1095, 4
      %v1261 = vpop.permute.xlu0 %1260
      %1262 = vrot.lane.b32.xlu0 %v1096, 4
      %v1263 = vpop.permute.xlu0 %1262
      %1264 = vrot.lane.b32.xlu0 %v1097, 4
      %v1265 = vpop.permute.xlu0 %1264
      %1266 = vrot.lane.b32.xlu0 %v1098, 4
      %v1267 = vpop.permute.xlu0 %1266
      %1268 = vrot.lane.b32.xlu0 %v1099, 4
      %v1269 = vpop.permute.xlu0 %1268
      %1270 = vrot.lane.b32.xlu0 %v1100, 4
      %v1271 = vpop.permute.xlu0 %1270
      %1272 = vrot.lane.b32.xlu0 %v1101, 4
      %v1273 = vpop.permute.xlu0 %1272
      %1304 = vrot.lane.b32.xlu0 %v1186, 8
      %v1305 = vpop.permute.xlu0 %1304
      %1306 = vrot.lane.b32.xlu0 %v1224, 8
      %v1307 = vpop.permute.xlu0 %1306
      %1308 = vrot.lane.b32.xlu0 %v1189, 8
      %v1309 = vpop.permute.xlu0 %1308
      %1310 = vrot.lane.b32.xlu0 %v1225, 8
      %v1311 = vpop.permute.xlu0 %1310
      %1312 = vrot.lane.b32.xlu0 %v1192, 8
      %v1313 = vpop.permute.xlu0 %1312
      %1314 = vrot.lane.b32.xlu0 %v1226, 8
      %v1315 = vpop.permute.xlu0 %1314
      %1316 = vrot.lane.b32.xlu0 %v1195, 8
      %v1317 = vpop.permute.xlu0 %1316
      %1318 = vrot.lane.b32.xlu0 %v1227, 8
      %v1319 = vpop.permute.xlu0 %1318
      %1320 = vrot.lane.b32.xlu0 %v1198, 8
      %v1321 = vpop.permute.xlu0 %1320
      %1322 = vrot.lane.b32.xlu0 %v1228, 8
      %v1323 = vpop.permute.xlu0 %1322
      %1324 = vrot.lane.b32.xlu0 %v1201, 8
      %v1325 = vpop.permute.xlu0 %1324
      %1326 = vrot.lane.b32.xlu0 %v1229, 8
      %v1327 = vpop.permute.xlu0 %1326
      %1328 = vrot.lane.b32.xlu0 %v1204, 8
      %v1329 = vpop.permute.xlu0 %1328
      %1330 = vrot.lane.b32.xlu0 %v1230, 8
      %v1331 = vpop.permute.xlu0 %1330
      %1332 = vrot.lane.b32.xlu0 %v1207, 8
      %v1333 = vpop.permute.xlu0 %1332
      %1334 = vrot.lane.b32.xlu0 %v1231, 8
      %v1335 = vpop.permute.xlu0 %1334
      %1336 = vrot.lane.b32.xlu0 %v1210, 8
      %v1337 = vpop.permute.xlu0 %1336
      %1338 = vrot.lane.b32.xlu0 %v1232, 8
      %v1339 = vpop.permute.xlu0 %1338
      %1340 = vrot.lane.b32.xlu0 %v1213, 8
      %v1341 = vpop.permute.xlu0 %1340
      %1342 = vrot.lane.b32.xlu0 %v1233, 8
      %v1343 = vpop.permute.xlu0 %1342
      %v1364 = vsel %vm661, %v1173, %v1235
      %v1365 = vsel %vm661, %v1125, %v1237
      %v1366 = vsel %vm661, %v1174, %v1239
      %v1367 = vsel %vm661, %v1128, %v1241
      %v1368 = vsel %vm661, %v1175, %v1243
      %v1369 = vsel %vm661, %v1131, %v1245
      %v1370 = vsel %vm661, %v1176, %v1247
      %v1371 = vsel %vm661, %v1134, %v1249
      %v1372 = vsel %vm661, %v1177, %v1251
      %v1373 = vsel %vm661, %v1137, %v1253
      %v1374 = vsel %vm661, %v1178, %v1255
      %v1375 = vsel %vm661, %v1140, %v1257
      %v1376 = vsel %vm661, %v1179, %v1259
      %v1377 = vsel %vm661, %v1143, %v1261
      %v1378 = vsel %vm661, %v1180, %v1263
      %v1379 = vsel %vm661, %v1146, %v1265
      %v1380 = vsel %vm661, %v1181, %v1267
      %v1381 = vsel %vm661, %v1149, %v1269
      %v1382 = vsel %vm661, %v1182, %v1271
      %v1383 = vsel %vm661, %v1152, %v1273
      %vm1384 = vcmask 64512
      %v1385 = vsel %vm1384, %v1364, %v1305
      %v1386 = vsel %vm1384, %v1365, %v1307
      %v1387 = vsel %vm1384, %v1366, %v1309
      %v1388 = vsel %vm1384, %v1367, %v1311
      %v1389 = vsel %vm1384, %v1368, %v1313
      %v1390 = vsel %vm1384, %v1369, %v1315
      %v1391 = vsel %vm1384, %v1370, %v1317
      %v1392 = vsel %vm1384, %v1371, %v1319
      %v1393 = vsel %vm1384, %v1372, %v1321
      %v1394 = vsel %vm1384, %v1373, %v1323
      %v1395 = vsel %vm1384, %v1374, %v1325
      %v1396 = vsel %vm1384, %v1375, %v1327
      %v1397 = vsel %vm1384, %v1376, %v1329
      %v1398 = vsel %vm1384, %v1377, %v1331
      %v1399 = vsel %vm1384, %v1378, %v1333
      %v1400 = vsel %vm1384, %v1379, %v1335
      %v1401 = vsel %vm1384, %v1380, %v1337
      %v1402 = vsel %vm1384, %v1381, %v1339
      %v1403 = vsel %vm1384, %v1382, %v1341
      %v1404 = vsel %vm1384, %v1383, %v1343
      %v1405 = vpack.c.bf16 %v1386, %v1385
      %v1406 = vpack.c.bf16 %v1388, %v1387
      %v1407 = vpack.c.bf16 %v1390, %v1389
      %v1408 = vpack.c.bf16 %v1392, %v1391
      %v1409 = vpack.c.bf16 %v1394, %v1393
      %v1410 = vpack.c.bf16 %v1396, %v1395
      %v1411 = vpack.c.bf16 %v1398, %v1397
      %v1412 = vpack.c.bf16 %v1400, %v1399
      %v1413 = vpack.c.bf16 %v1402, %v1401
      %v1414 = vpack.c.bf16 %v1404, %v1403
      %v1415 = vld [vmem:[%s7] sm:$0xf]
      %v1416 = vld [vmem:[%s7 + $0x4] sm:$0x3]
      %s1417 = scalar_lea.vmem %s7, 8
      %v1418 = vld [vmem:[%s1417] sm:$0xf]
      %v1419 = vld [vmem:[%s1417 + $0x4] sm:$0x3]
      %v1422 = vunpack.c.l.b16 %v1418
      %v1423 = vunpack.c.l.b16 %v1419
      %v1424 = vpack.c.b16 %v1423, %v1422
      %vm1425 = vcmask 97280
      %v1427 = vsel %vm1425, %v1406, 0
      %v1430 = vsel %vm1425, %v1407, 0
      %v1433 = vsel %vm1425, %v1408, 0
      %v1436 = vsel %vm1425, %v1409, 0
      %v1439 = vsel %vm1425, %v1410, 0
      %v1442 = vsel %vm1425, %v1411, 0
      %v1445 = vsel %vm1425, %v1412, 0
      %v1448 = vsel %vm1425, %v1413, 0
      %vm1450 = vcmask 1045504
      %v1452 = vsel %vm1450, %v1424, 0
      %1454 = vmatprep.subr.bf16.mxu0 0
      %1455 = vmatpush1.bf16.msra.mxu0 0
      %1456 = vmatprep.subr.bf16.mxu0 0
      %1457 = vmatpush1.bf16.msra.mxu0 0
      %1458 = vmatprep.subr.bf16.mxu0 0
      %1459 = vmatpush1.bf16.msra.mxu0 0
      %1460 = vmatprep.subr.bf16.mxu0 0
      %1461 = vmatpush1.bf16.msra.mxu0 0
      %1462 = vmatprep.subr.bf16.mxu0 0
      %1463 = vmatpush1.bf16.msra.mxu0 0
      %1464 = vmatprep.subr.bf16.mxu0 0
      %1465 = vmatpush1.bf16.msra.mxu0 0
      %1466 = vmatprep.subr.bf16.mxu0 0
      %1467 = vmatpush1.bf16.msra.mxu0 0
      %1468 = vmatprep.subr.bf16.mxu0 0
      %1469 = vmatpush1.bf16.msra.mxu0 %v1452
      %1470 = vmatprep.subr.bf16.mxu0 0
      %1471 = vmatpush2.bf16.msra.mxu0 0
      %1472 = vmatprep.subr.bf16.mxu0 0
      %1473 = vmatpush2.bf16.msra.mxu0 0
      %1474 = vmatprep.subr.bf16.mxu0 0
      %1475 = vmatpush2.bf16.msra.mxu0 0
      %1476 = vmatprep.subr.bf16.mxu0 0
      %1477 = vmatpush2.bf16.msra.mxu0 0
      %1478 = vmatprep.subr.bf16.mxu0 0
      %1479 = vmatpush2.bf16.msra.mxu0 0
      %1480 = vmatprep.subr.bf16.mxu0 0
      %1481 = vmatpush2.bf16.msra.mxu0 0
      %1482 = vmatprep.subr.bf16.mxu0 0
      %1483 = vmatpush2.bf16.msra.mxu0 0
      %1484 = vmatprep.subr.bf16.mxu0 0
      %1485 = vmatpush2.bf16.msra.mxu0 0
      %1486 = vmatprep.mubr.bf16.mxu0 0
      %1487 = vmatmul.mubr.bf16.gmra.mxu0 %v1427
      %v1488 = vpop.f32.mrf.mxu0
      %v1489 = vadd.f32 0.0, %v1488
      %v1490 = vpop.f32.mrf.mxu0
      %v1491 = vpop.f32.mrf.mxu0
      %v1492 = vadd.f32 0.0, %v1491
      %v1493 = vpop.f32.mrf.mxu0
      %1494 = vmatprep.mubr.bf16.mxu0 0
      %1495 = vmatmul.mubr.bf16.gmra.mxu0 %v1430
      %v1496 = vpop.f32.mrf.mxu0
      %v1497 = vadd.f32 0.0, %v1496
      %v1498 = vpop.f32.mrf.mxu0
      %v1499 = vpop.f32.mrf.mxu0
      %v1500 = vadd.f32 0.0, %v1499
      %v1501 = vpop.f32.mrf.mxu0
      %1502 = vmatprep.mubr.bf16.mxu0 0
      %1503 = vmatmul.mubr.bf16.gmra.mxu0 %v1433
      %v1504 = vpop.f32.mrf.mxu0
      %v1505 = vadd.f32 0.0, %v1504
      %v1506 = vpop.f32.mrf.mxu0
      %v1507 = vpop.f32.mrf.mxu0
      %v1508 = vadd.f32 0.0, %v1507
      %v1509 = vpop.f32.mrf.mxu0
      %1510 = vmatprep.mubr.bf16.mxu0 0
      %1511 = vmatmul.mubr.bf16.gmra.mxu0 %v1436
      %v1512 = vpop.f32.mrf.mxu0
      %v1513 = vadd.f32 0.0, %v1512
      %v1514 = vpop.f32.mrf.mxu0
      %v1515 = vpop.f32.mrf.mxu0
      %v1516 = vadd.f32 0.0, %v1515
      %v1517 = vpop.f32.mrf.mxu0
      %1518 = vmatprep.mubr.bf16.mxu0 0
      %1519 = vmatmul.mubr.bf16.gmra.mxu0 %v1439
      %v1520 = vpop.f32.mrf.mxu0
      %v1521 = vadd.f32 0.0, %v1520
      %v1522 = vpop.f32.mrf.mxu0
      %v1523 = vpop.f32.mrf.mxu0
      %v1524 = vadd.f32 0.0, %v1523
      %v1525 = vpop.f32.mrf.mxu0
      %1526 = vmatprep.mubr.bf16.mxu0 0
      %1527 = vmatmul.mubr.bf16.gmra.mxu0 %v1442
      %v1528 = vpop.f32.mrf.mxu0
      %v1529 = vadd.f32 0.0, %v1528
      %v1530 = vpop.f32.mrf.mxu0
      %v1531 = vpop.f32.mrf.mxu0
      %v1532 = vadd.f32 0.0, %v1531
      %v1533 = vpop.f32.mrf.mxu0
      %1534 = vmatprep.mubr.bf16.mxu0 0
      %1535 = vmatmul.mubr.bf16.gmra.mxu0 %v1445
      %v1536 = vpop.f32.mrf.mxu0
      %v1537 = vadd.f32 0.0, %v1536
      %v1538 = vpop.f32.mrf.mxu0
      %v1539 = vpop.f32.mrf.mxu0
      %v1540 = vadd.f32 0.0, %v1539
      %v1541 = vpop.f32.mrf.mxu0
      %1542 = vmatprep.mubr.bf16.mxu0 0
      %1543 = vmatmul.mubr.bf16.gmra.mxu0 %v1448
      %v1544 = vpop.f32.mrf.mxu0
      %v1545 = vadd.f32 0.0, %v1544
      %v1546 = vpop.f32.mrf.mxu0
      %v1547 = vpop.f32.mrf.mxu0
      %v1548 = vadd.f32 0.0, %v1547
      %v1549 = vpop.f32.mrf.mxu0
      %1550 = vdwg.mxu0
      %v1553 = vunpack.c.l.b16 %v1415
      %v1554 = vunpack.c.l.b16 %v1416
      %v1555 = vpack.c.b16 %v1554, %v1553
      %v1557 = vsel %vm1425, %v1405, 0
      %v1560 = vsel %vm1450, %v1555, 0
      %1562 = vmatprep.subr.bf16.mxu0 0
      %1563 = vmatpush1.bf16.msra.mxu0 0
      %1564 = vmatprep.subr.bf16.mxu0 0
      %1565 = vmatpush1.bf16.msra.mxu0 0
      %1566 = vmatprep.subr.bf16.mxu0 0
      %1567 = vmatpush1.bf16.msra.mxu0 0
      %1568 = vmatprep.subr.bf16.mxu0 0
      %1569 = vmatpush1.bf16.msra.mxu0 0
      %1570 = vmatprep.subr.bf16.mxu0 0
      %1571 = vmatpush1.bf16.msra.mxu0 0
      %1572 = vmatprep.subr.bf16.mxu0 0
      %1573 = vmatpush1.bf16.msra.mxu0 0
      %1574 = vmatprep.subr.bf16.mxu0 0
      %1575 = vmatpush1.bf16.msra.mxu0 0
      %1576 = vmatprep.subr.bf16.mxu0 0
      %1577 = vmatpush1.bf16.msra.mxu0 %v1560
      %1578 = vmatprep.subr.bf16.mxu0 0
      %1579 = vmatpush2.bf16.msra.mxu0 0
      %1580 = vmatprep.subr.bf16.mxu0 0
      %1581 = vmatpush2.bf16.msra.mxu0 0
      %1582 = vmatprep.subr.bf16.mxu0 0
      %1583 = vmatpush2.bf16.msra.mxu0 0
      %1584 = vmatprep.subr.bf16.mxu0 0
      %1585 = vmatpush2.bf16.msra.mxu0 0
      %1586 = vmatprep.subr.bf16.mxu0 0
      %1587 = vmatpush2.bf16.msra.mxu0 0
      %1588 = vmatprep.subr.bf16.mxu0 0
      %1589 = vmatpush2.bf16.msra.mxu0 0
      %1590 = vmatprep.subr.bf16.mxu0 0
      %1591 = vmatpush2.bf16.msra.mxu0 0
      %1592 = vmatprep.subr.bf16.mxu0 0
      %1593 = vmatpush2.bf16.msra.mxu0 0
      %1594 = vmatprep.mubr.bf16.mxu0 0
      %1595 = vmatmul.mubr.bf16.gmra.mxu0 %v1557
      %v1596 = vpop.f32.mrf.mxu0
      %v1597 = vadd.f32 %v1489, %v1596
      %v1598 = vpop.f32.mrf.mxu0
      %v1599 = vpop.f32.mrf.mxu0
      %v1600 = vadd.f32 %v1492, %v1599
      %v1601 = vpop.f32.mrf.mxu0
      %1602 = vmatprep.mubr.bf16.mxu0 0
      %1603 = vmatmul.mubr.bf16.gmra.mxu0 %v1427
      %v1604 = vpop.f32.mrf.mxu0
      %v1605 = vadd.f32 %v1497, %v1604
      %v1606 = vpop.f32.mrf.mxu0
      %v1607 = vpop.f32.mrf.mxu0
      %v1608 = vadd.f32 %v1500, %v1607
      %v1609 = vpop.f32.mrf.mxu0
      %1610 = vmatprep.mubr.bf16.mxu0 0
      %1611 = vmatmul.mubr.bf16.gmra.mxu0 %v1430
      %v1612 = vpop.f32.mrf.mxu0
      %v1613 = vadd.f32 %v1505, %v1612
      %v1614 = vpop.f32.mrf.mxu0
      %v1615 = vpop.f32.mrf.mxu0
      %v1616 = vadd.f32 %v1508, %v1615
      %v1617 = vpop.f32.mrf.mxu0
      %1618 = vmatprep.mubr.bf16.mxu0 0
      %1619 = vmatmul.mubr.bf16.gmra.mxu0 %v1433
      %v1620 = vpop.f32.mrf.mxu0
      %v1621 = vadd.f32 %v1513, %v1620
      %v1622 = vpop.f32.mrf.mxu0
      %v1623 = vpop.f32.mrf.mxu0
      %v1624 = vadd.f32 %v1516, %v1623
      %v1625 = vpop.f32.mrf.mxu0
      %1626 = vmatprep.mubr.bf16.mxu0 0
      %1627 = vmatmul.mubr.bf16.gmra.mxu0 %v1436
      %v1628 = vpop.f32.mrf.mxu0
      %v1629 = vadd.f32 %v1521, %v1628
      %v1630 = vpop.f32.mrf.mxu0
      %v1631 = vpop.f32.mrf.mxu0
      %v1632 = vadd.f32 %v1524, %v1631
      %v1633 = vpop.f32.mrf.mxu0
      %1634 = vmatprep.mubr.bf16.mxu0 0
      %1635 = vmatmul.mubr.bf16.gmra.mxu0 %v1439
      %v1636 = vpop.f32.mrf.mxu0
      %v1637 = vadd.f32 %v1529, %v1636
      %v1638 = vpop.f32.mrf.mxu0
      %v1639 = vpop.f32.mrf.mxu0
      %v1640 = vadd.f32 %v1532, %v1639
      %v1641 = vpop.f32.mrf.mxu0
      %1642 = vmatprep.mubr.bf16.mxu0 0
      %1643 = vmatmul.mubr.bf16.gmra.mxu0 %v1442
      %v1644 = vpop.f32.mrf.mxu0
      %v1645 = vadd.f32 %v1537, %v1644
      %v1646 = vpop.f32.mrf.mxu0
      %v1647 = vpop.f32.mrf.mxu0
      %v1648 = vadd.f32 %v1540, %v1647
      %v1649 = vpop.f32.mrf.mxu0
      %1650 = vmatprep.mubr.bf16.mxu0 0
      %1651 = vmatmul.mubr.bf16.gmra.mxu0 %v1445
      %v1652 = vpop.f32.mrf.mxu0
      %v1653 = vadd.f32 %v1545, %v1652
      %v1654 = vpop.f32.mrf.mxu0
      %v1655 = vpop.f32.mrf.mxu0
      %v1656 = vadd.f32 %v1548, %v1655
      %v1657 = vpop.f32.mrf.mxu0
      %1658 = vdwg.mxu0
      %s1659 = scalar_lea.vmem %s7, 16
      %v1660 = vld [vmem:[%s1659] sm:$0xf]
      %v1661 = vld [vmem:[%s1659 + $0x4] sm:$0x3]
      %v1664 = vunpack.c.l.b16 %v1660
      %v1665 = vunpack.c.l.b16 %v1661
      %v1666 = vpack.c.b16 %v1665, %v1664
      %v1668 = vsel %vm1425, %v1414, 0
      %v1671 = vsel %vm1450, %v1666, 0
      %1673 = vmatprep.subr.bf16.mxu0 0
      %1674 = vmatpush1.bf16.msra.mxu0 0
      %1675 = vmatprep.subr.bf16.mxu0 0
      %1676 = vmatpush1.bf16.msra.mxu0 0
      %1677 = vmatprep.subr.bf16.mxu0 0
      %1678 = vmatpush1.bf16.msra.mxu0 0
      %1679 = vmatprep.subr.bf16.mxu0 0
      %1680 = vmatpush1.bf16.msra.mxu0 0
      %1681 = vmatprep.subr.bf16.mxu0 0
      %1682 = vmatpush1.bf16.msra.mxu0 0
      %1683 = vmatprep.subr.bf16.mxu0 0
      %1684 = vmatpush1.bf16.msra.mxu0 0
      %1685 = vmatprep.subr.bf16.mxu0 0
      %1686 = vmatpush1.bf16.msra.mxu0 0
      %1687 = vmatprep.subr.bf16.mxu0 0
      %1688 = vmatpush1.bf16.msra.mxu0 %v1671
      %1689 = vmatprep.subr.bf16.mxu0 0
      %1690 = vmatpush2.bf16.msra.mxu0 0
      %1691 = vmatprep.subr.bf16.mxu0 0
      %1692 = vmatpush2.bf16.msra.mxu0 0
      %1693 = vmatprep.subr.bf16.mxu0 0
      %1694 = vmatpush2.bf16.msra.mxu0 0
      %1695 = vmatprep.subr.bf16.mxu0 0
      %1696 = vmatpush2.bf16.msra.mxu0 0
      %1697 = vmatprep.subr.bf16.mxu0 0
      %1698 = vmatpush2.bf16.msra.mxu0 0
      %1699 = vmatprep.subr.bf16.mxu0 0
      %1700 = vmatpush2.bf16.msra.mxu0 0
      %1701 = vmatprep.subr.bf16.mxu0 0
      %1702 = vmatpush2.bf16.msra.mxu0 0
      %1703 = vmatprep.subr.bf16.mxu0 0
      %1704 = vmatpush2.bf16.msra.mxu0 0
      %1705 = vmatprep.mubr.bf16.mxu0 0
      %1706 = vmatmul.mubr.bf16.gmra.mxu0 %v1430
      %v1707 = vpop.f32.mrf.mxu0
      %v1708 = vadd.f32 0.0, %v1707
      %v1709 = vpop.f32.mrf.mxu0
      %v1710 = vpop.f32.mrf.mxu0
      %v1711 = vadd.f32 0.0, %v1710
      %v1712 = vpop.f32.mrf.mxu0
      %1713 = vmatprep.mubr.bf16.mxu0 0
      %1714 = vmatmul.mubr.bf16.gmra.mxu0 %v1433
      %v1715 = vpop.f32.mrf.mxu0
      %v1716 = vadd.f32 0.0, %v1715
      %v1717 = vpop.f32.mrf.mxu0
      %v1718 = vpop.f32.mrf.mxu0
      %v1719 = vadd.f32 0.0, %v1718
      %v1720 = vpop.f32.mrf.mxu0
      %1721 = vmatprep.mubr.bf16.mxu0 0
      %1722 = vmatmul.mubr.bf16.gmra.mxu0 %v1436
      %v1723 = vpop.f32.mrf.mxu0
      %v1724 = vadd.f32 0.0, %v1723
      %v1725 = vpop.f32.mrf.mxu0
      %v1726 = vpop.f32.mrf.mxu0
      %v1727 = vadd.f32 0.0, %v1726
      %v1728 = vpop.f32.mrf.mxu0
      %1729 = vmatprep.mubr.bf16.mxu0 0
      %1730 = vmatmul.mubr.bf16.gmra.mxu0 %v1439
      %v1731 = vpop.f32.mrf.mxu0
      %v1732 = vadd.f32 0.0, %v1731
      %v1733 = vpop.f32.mrf.mxu0
      %v1734 = vpop.f32.mrf.mxu0
      %v1735 = vadd.f32 0.0, %v1734
      %v1736 = vpop.f32.mrf.mxu0
      %1737 = vmatprep.mubr.bf16.mxu0 0
      %1738 = vmatmul.mubr.bf16.gmra.mxu0 %v1442
      %v1739 = vpop.f32.mrf.mxu0
      %v1740 = vadd.f32 0.0, %v1739
      %v1741 = vpop.f32.mrf.mxu0
      %v1742 = vpop.f32.mrf.mxu0
      %v1743 = vadd.f32 0.0, %v1742
      %v1744 = vpop.f32.mrf.mxu0
      %1745 = vmatprep.mubr.bf16.mxu0 0
      %1746 = vmatmul.mubr.bf16.gmra.mxu0 %v1445
      %v1747 = vpop.f32.mrf.mxu0
      %v1748 = vadd.f32 0.0, %v1747
      %v1749 = vpop.f32.mrf.mxu0
      %v1750 = vpop.f32.mrf.mxu0
      %v1751 = vadd.f32 0.0, %v1750
      %v1752 = vpop.f32.mrf.mxu0
      %1753 = vmatprep.mubr.bf16.mxu0 0
      %1754 = vmatmul.mubr.bf16.gmra.mxu0 %v1448
      %v1755 = vpop.f32.mrf.mxu0
      %v1756 = vadd.f32 0.0, %v1755
      %v1757 = vpop.f32.mrf.mxu0
      %v1758 = vpop.f32.mrf.mxu0
      %v1759 = vadd.f32 0.0, %v1758
      %v1760 = vpop.f32.mrf.mxu0
      %1761 = vmatprep.mubr.bf16.mxu0 0
      %1762 = vmatmul.mubr.bf16.gmra.mxu0 %v1668
      %v1763 = vpop.f32.mrf.mxu0
      %v1764 = vadd.f32 0.0, %v1763
      %v1765 = vpop.f32.mrf.mxu0
      %v1766 = vpop.f32.mrf.mxu0
      %v1767 = vadd.f32 0.0, %v1766
      %v1768 = vpop.f32.mrf.mxu0
      %1769 = vdwg.mxu0
      %v1770 = vadd.f32 %v1597, %v1708
      %v1771 = vadd.f32 %v1600, %v1711
      %v1772 = vadd.f32 %v1605, %v1716
      %v1773 = vadd.f32 %v1608, %v1719
      %v1774 = vadd.f32 %v1613, %v1724
      %v1775 = vadd.f32 %v1616, %v1727
      %v1776 = vadd.f32 %v1621, %v1732
      %v1777 = vadd.f32 %v1624, %v1735
      %v1778 = vadd.f32 %v1629, %v1740
      %v1779 = vadd.f32 %v1632, %v1743
      %v1780 = vadd.f32 %v1637, %v1748
      %v1781 = vadd.f32 %v1640, %v1751
      %v1782 = vadd.f32 %v1645, %v1756
      %v1783 = vadd.f32 %v1648, %v1759
      %v1784 = vadd.f32 %v1653, %v1764
      %v1785 = vadd.f32 %v1656, %v1767
      %v1786 = vld [vmem:[%s8] sm:$0x1]
      %v1788 = vlaneseq
      %v1789 = vshrl.u32 %v1788, 7
      %v1790 = vsub.s32 0, %v1789
      %v1791 = vrot.slane %v1786, %v1790
      %v1793 = vadd.f32 %v1770, %v1791
      %v1794 = vadd.f32 %v1771, %v1791
      %v1795 = vadd.f32 %v1772, %v1791
      %v1796 = vadd.f32 %v1773, %v1791
      %v1797 = vadd.f32 %v1774, %v1791
      %v1798 = vadd.f32 %v1775, %v1791
      %v1799 = vadd.f32 %v1776, %v1791
      %v1800 = vadd.f32 %v1777, %v1791
      %v1801 = vadd.f32 %v1778, %v1791
      %v1802 = vadd.f32 %v1779, %v1791
      %v1803 = vadd.f32 %v1780, %v1791
      %v1804 = vadd.f32 %v1781, %v1791
      %v1805 = vadd.f32 %v1782, %v1791
      %v1806 = vadd.f32 %v1783, %v1791
      %v1807 = vadd.f32 %v1784, %v1791
      %v1808 = vadd.f32 %v1785, %v1791
      %v1809 = vmax.f32 %v1793, 0.0
      %v1810 = vmax.f32 %v1794, 0.0
      %v1811 = vmax.f32 %v1795, 0.0
      %v1812 = vmax.f32 %v1796, 0.0
      %v1813 = vmax.f32 %v1797, 0.0
      %v1814 = vmax.f32 %v1798, 0.0
      %v1815 = vmax.f32 %v1799, 0.0
      %v1816 = vmax.f32 %v1800, 0.0
      %v1817 = vmax.f32 %v1801, 0.0
      %v1818 = vmax.f32 %v1802, 0.0
      %v1819 = vmax.f32 %v1803, 0.0
      %v1820 = vmax.f32 %v1804, 0.0
      %v1821 = vmax.f32 %v1805, 0.0
      %v1822 = vmax.f32 %v1806, 0.0
      %v1823 = vmax.f32 %v1807, 0.0
      %v1824 = vmax.f32 %v1808, 0.0
      %v1825 = vadd.f32 %v1809, %v811
      %v1826 = vadd.f32 %v1810, %v812
      %v1827 = vadd.f32 %v1811, %v813
      %v1828 = vadd.f32 %v1812, %v814
      %v1829 = vadd.f32 %v1813, %v815
      %v1830 = vadd.f32 %v1814, %v816
      %v1831 = vadd.f32 %v1815, %v817
      %v1832 = vadd.f32 %v1816, %v818
      %v1833 = vadd.f32 %v1817, %v819
      %v1834 = vadd.f32 %v1818, %v820
      %v1835 = vadd.f32 %v1819, %v821
      %v1836 = vadd.f32 %v1820, %v822
      %v1837 = vadd.f32 %v1821, %v823
      %v1838 = vadd.f32 %v1822, %v824
      %v1839 = vadd.f32 %v1823, %v825
      %v1840 = vadd.f32 %v1824, %v826
      %v1841 = vpack.c.bf16 %v1826, %v1825
      %v1842 = vpack.c.bf16 %v1828, %v1827
      %v1843 = vpack.c.bf16 %v1830, %v1829
      %v1844 = vpack.c.bf16 %v1832, %v1831
      %v1845 = vpack.c.bf16 %v1834, %v1833
      %v1846 = vpack.c.bf16 %v1836, %v1835
      %v1847 = vpack.c.bf16 %v1838, %v1837
      %v1848 = vpack.c.bf16 %v1840, %v1839
      %v1849 = vld [vmem:[%s9] sm:$0x3]
      %v1850 = vld [vmem:[%s10] sm:$0x3]
      %1859 = vrot.lane.b32.xlu0 %v830, 124
      %v1860 = vpop.permute.xlu0 %1859
      %1861 = vrot.lane.b32.xlu0 %v831, 124
      %v1862 = vpop.permute.xlu0 %1861
      %1863 = vrot.lane.b32.xlu0 %v832, 124
      %v1864 = vpop.permute.xlu0 %1863
      %1865 = vrot.lane.b32.xlu0 %v833, 124
      %v1866 = vpop.permute.xlu0 %1865
      %1867 = vrot.lane.b32.xlu0 %v834, 124
      %v1868 = vpop.permute.xlu0 %1867
      %1869 = vrot.lane.b32.xlu0 %v835, 124
      %v1870 = vpop.permute.xlu0 %1869
      %1871 = vrot.lane.b32.xlu0 %v836, 124
      %v1872 = vpop.permute.xlu0 %1871
      %1873 = vrot.lane.b32.xlu0 %v837, 124
      %v1874 = vpop.permute.xlu0 %1873
      %v1876 = vsel %vm661, %v1860, 0
      %v1879 = vsel %vm661, %v1862, 0
      %v1882 = vsel %vm661, %v1864, 0
      %v1885 = vsel %vm661, %v1866, 0
      %v1888 = vsel %vm661, %v1868, 0
      %v1891 = vsel %vm661, %v1870, 0
      %v1894 = vsel %vm661, %v1872, 0
      %v1897 = vsel %vm661, %v1874, 0
      %v1900 = vsel %vm692, %v1850, 0
      %1902 = vmatprep.subr.bf16.mxu0 0
      %1903 = vmatpush1.bf16.msra.mxu0 0
      %1904 = vmatprep.subr.bf16.mxu0 0
      %1905 = vmatpush1.bf16.msra.mxu0 0
      %1906 = vmatprep.subr.bf16.mxu0 0
      %1907 = vmatpush1.bf16.msra.mxu0 0
      %1908 = vmatprep.subr.bf16.mxu0 0
      %1909 = vmatpush1.bf16.msra.mxu0 0
      %1910 = vmatprep.subr.bf16.mxu0 0
      %1911 = vmatpush1.bf16.msra.mxu0 0
      %1912 = vmatprep.subr.bf16.mxu0 0
      %1913 = vmatpush1.bf16.msra.mxu0 0
      %1914 = vmatprep.subr.bf16.mxu0 0
      %1915 = vmatpush1.bf16.msra.mxu0 0
      %1916 = vmatprep.subr.bf16.mxu0 0
      %1917 = vmatpush1.bf16.msra.mxu0 %v1900
      %1918 = vmatprep.subr.bf16.mxu0 0
      %1919 = vmatpush2.bf16.msra.mxu0 0
      %1920 = vmatprep.subr.bf16.mxu0 0
      %1921 = vmatpush2.bf16.msra.mxu0 0
      %1922 = vmatprep.subr.bf16.mxu0 0
      %1923 = vmatpush2.bf16.msra.mxu0 0
      %1924 = vmatprep.subr.bf16.mxu0 0
      %1925 = vmatpush2.bf16.msra.mxu0 0
      %1926 = vmatprep.subr.bf16.mxu0 0
      %1927 = vmatpush2.bf16.msra.mxu0 0
      %1928 = vmatprep.subr.bf16.mxu0 0
      %1929 = vmatpush2.bf16.msra.mxu0 0
      %1930 = vmatprep.subr.bf16.mxu0 0
      %1931 = vmatpush2.bf16.msra.mxu0 0
      %1932 = vmatprep.subr.bf16.mxu0 0
      %1933 = vmatpush2.bf16.msra.mxu0 0
      %1934 = vmatprep.mubr.bf16.mxu0 0
      %1935 = vmatmul.mubr.bf16.gmra.mxu0 %v1876
      %v1936 = vpop.f32.mrf.mxu0
      %v1937 = vadd.f32 0.0, %v1936
      %v1938 = vpop.f32.mrf.mxu0
      %v1939 = vpop.f32.mrf.mxu0
      %v1940 = vadd.f32 0.0, %v1939
      %v1941 = vpop.f32.mrf.mxu0
      %1942 = vmatprep.mubr.bf16.mxu0 0
      %1943 = vmatmul.mubr.bf16.gmra.mxu0 %v1879
      %v1944 = vpop.f32.mrf.mxu0
      %v1945 = vadd.f32 0.0, %v1944
      %v1946 = vpop.f32.mrf.mxu0
      %v1947 = vpop.f32.mrf.mxu0
      %v1948 = vadd.f32 0.0, %v1947
      %v1949 = vpop.f32.mrf.mxu0
      %1950 = vmatprep.mubr.bf16.mxu0 0
      %1951 = vmatmul.mubr.bf16.gmra.mxu0 %v1882
      %v1952 = vpop.f32.mrf.mxu0
      %v1953 = vadd.f32 0.0, %v1952
      %v1954 = vpop.f32.mrf.mxu0
      %v1955 = vpop.f32.mrf.mxu0
      %v1956 = vadd.f32 0.0, %v1955
      %v1957 = vpop.f32.mrf.mxu0
      %1958 = vmatprep.mubr.bf16.mxu0 0
      %1959 = vmatmul.mubr.bf16.gmra.mxu0 %v1885
      %v1960 = vpop.f32.mrf.mxu0
      %v1961 = vadd.f32 0.0, %v1960
      %v1962 = vpop.f32.mrf.mxu0
      %v1963 = vpop.f32.mrf.mxu0
      %v1964 = vadd.f32 0.0, %v1963
      %v1965 = vpop.f32.mrf.mxu0
      %1966 = vmatprep.mubr.bf16.mxu0 0
      %1967 = vmatmul.mubr.bf16.gmra.mxu0 %v1888
      %v1968 = vpop.f32.mrf.mxu0
      %v1969 = vadd.f32 0.0, %v1968
      %v1970 = vpop.f32.mrf.mxu0
      %v1971 = vpop.f32.mrf.mxu0
      %v1972 = vadd.f32 0.0, %v1971
      %v1973 = vpop.f32.mrf.mxu0
      %1974 = vmatprep.mubr.bf16.mxu0 0
      %1975 = vmatmul.mubr.bf16.gmra.mxu0 %v1891
      %v1976 = vpop.f32.mrf.mxu0
      %v1977 = vadd.f32 0.0, %v1976
      %v1978 = vpop.f32.mrf.mxu0
      %v1979 = vpop.f32.mrf.mxu0
      %v1980 = vadd.f32 0.0, %v1979
      %v1981 = vpop.f32.mrf.mxu0
      %1982 = vmatprep.mubr.bf16.mxu0 0
      %1983 = vmatmul.mubr.bf16.gmra.mxu0 %v1894
      %v1984 = vpop.f32.mrf.mxu0
      %v1985 = vadd.f32 0.0, %v1984
      %v1986 = vpop.f32.mrf.mxu0
      %v1987 = vpop.f32.mrf.mxu0
      %v1988 = vadd.f32 0.0, %v1987
      %v1989 = vpop.f32.mrf.mxu0
      %1990 = vmatprep.mubr.bf16.mxu0 0
      %1991 = vmatmul.mubr.bf16.gmra.mxu0 %v1897
      %v1992 = vpop.f32.mrf.mxu0
      %v1993 = vadd.f32 0.0, %v1992
      %v1994 = vpop.f32.mrf.mxu0
      %v1995 = vpop.f32.mrf.mxu0
      %v1996 = vadd.f32 0.0, %v1995
      %v1997 = vpop.f32.mrf.mxu0
      %1998 = vdwg.mxu0
      %v2000 = vsel %vm661, %v1841, 0
      %v2003 = vsel %vm661, %v1842, 0
      %v2006 = vsel %vm661, %v1843, 0
      %v2009 = vsel %vm661, %v1844, 0
      %v2012 = vsel %vm661, %v1845, 0
      %v2015 = vsel %vm661, %v1846, 0
      %v2018 = vsel %vm661, %v1847, 0
      %v2021 = vsel %vm661, %v1848, 0
      %v2024 = vsel %vm692, %v1849, 0
      %2026 = vmatprep.subr.bf16.mxu0 0
      %2027 = vmatpush1.bf16.msra.mxu0 0
      %2028 = vmatprep.subr.bf16.mxu0 0
      %2029 = vmatpush1.bf16.msra.mxu0 0
      %2030 = vmatprep.subr.bf16.mxu0 0
      %2031 = vmatpush1.bf16.msra.mxu0 0
      %2032 = vmatprep.subr.bf16.mxu0 0
      %2033 = vmatpush1.bf16.msra.mxu0 0
      %2034 = vmatprep.subr.bf16.mxu0 0
      %2035 = vmatpush1.bf16.msra.mxu0 0
      %2036 = vmatprep.subr.bf16.mxu0 0
      %2037 = vmatpush1.bf16.msra.mxu0 0
      %2038 = vmatprep.subr.bf16.mxu0 0
      %2039 = vmatpush1.bf16.msra.mxu0 0
      %2040 = vmatprep.subr.bf16.mxu0 0
      %2041 = vmatpush1.bf16.msra.mxu0 %v2024
      %2042 = vmatprep.subr.bf16.mxu0 0
      %2043 = vmatpush2.bf16.msra.mxu0 0
      %2044 = vmatprep.subr.bf16.mxu0 0
      %2045 = vmatpush2.bf16.msra.mxu0 0
      %2046 = vmatprep.subr.bf16.mxu0 0
      %2047 = vmatpush2.bf16.msra.mxu0 0
      %2048 = vmatprep.subr.bf16.mxu0 0
      %2049 = vmatpush2.bf16.msra.mxu0 0
      %2050 = vmatprep.subr.bf16.mxu0 0
      %2051 = vmatpush2.bf16.msra.mxu0 0
      %2052 = vmatprep.subr.bf16.mxu0 0
      %2053 = vmatpush2.bf16.msra.mxu0 0
      %2054 = vmatprep.subr.bf16.mxu0 0
      %2055 = vmatpush2.bf16.msra.mxu0 0
      %2056 = vmatprep.subr.bf16.mxu0 0
      %2057 = vmatpush2.bf16.msra.mxu0 0
      %2058 = vmatprep.mubr.bf16.mxu0 0
      %2059 = vmatmul.mubr.bf16.gmra.mxu0 %v2000
      %v2060 = vpop.f32.mrf.mxu0
      %v2061 = vadd.f32 %v1937, %v2060
      %v2062 = vpop.f32.mrf.mxu0
      %v2063 = vpop.f32.mrf.mxu0
      %v2064 = vadd.f32 %v1940, %v2063
      %v2065 = vpop.f32.mrf.mxu0
      %2066 = vmatprep.mubr.bf16.mxu0 0
      %2067 = vmatmul.mubr.bf16.gmra.mxu0 %v2003
      %v2068 = vpop.f32.mrf.mxu0
      %v2069 = vadd.f32 %v1945, %v2068
      %v2070 = vpop.f32.mrf.mxu0
      %v2071 = vpop.f32.mrf.mxu0
      %v2072 = vadd.f32 %v1948, %v2071
      %v2073 = vpop.f32.mrf.mxu0
      %2074 = vmatprep.mubr.bf16.mxu0 0
      %2075 = vmatmul.mubr.bf16.gmra.mxu0 %v2006
      %v2076 = vpop.f32.mrf.mxu0
      %v2077 = vadd.f32 %v1953, %v2076
      %v2078 = vpop.f32.mrf.mxu0
      %v2079 = vpop.f32.mrf.mxu0
      %v2080 = vadd.f32 %v1956, %v2079
      %v2081 = vpop.f32.mrf.mxu0
      %2082 = vmatprep.mubr.bf16.mxu0 0
      %2083 = vmatmul.mubr.bf16.gmra.mxu0 %v2009
      %v2084 = vpop.f32.mrf.mxu0
      %v2085 = vadd.f32 %v1961, %v2084
      %v2086 = vpop.f32.mrf.mxu0
      %v2087 = vpop.f32.mrf.mxu0
      %v2088 = vadd.f32 %v1964, %v2087
      %v2089 = vpop.f32.mrf.mxu0
      %2090 = vmatprep.mubr.bf16.mxu0 0
      %2091 = vmatmul.mubr.bf16.gmra.mxu0 %v2012
      %v2092 = vpop.f32.mrf.mxu0
      %v2093 = vadd.f32 %v1969, %v2092
      %v2094 = vpop.f32.mrf.mxu0
      %v2095 = vpop.f32.mrf.mxu0
      %v2096 = vadd.f32 %v1972, %v2095
      %v2097 = vpop.f32.mrf.mxu0
      %2098 = vmatprep.mubr.bf16.mxu0 0
      %2099 = vmatmul.mubr.bf16.gmra.mxu0 %v2015
      %v2100 = vpop.f32.mrf.mxu0
      %v2101 = vadd.f32 %v1977, %v2100
      %v2102 = vpop.f32.mrf.mxu0
      %v2103 = vpop.f32.mrf.mxu0
      %v2104 = vadd.f32 %v1980, %v2103
      %v2105 = vpop.f32.mrf.mxu0
      %2106 = vmatprep.mubr.bf16.mxu0 0
      %2107 = vmatmul.mubr.bf16.gmra.mxu0 %v2018
      %v2108 = vpop.f32.mrf.mxu0
      %v2109 = vadd.f32 %v1985, %v2108
      %v2110 = vpop.f32.mrf.mxu0
      %v2111 = vpop.f32.mrf.mxu0
      %v2112 = vadd.f32 %v1988, %v2111
      %v2113 = vpop.f32.mrf.mxu0
      %2114 = vmatprep.mubr.bf16.mxu0 0
      %2115 = vmatmul.mubr.bf16.gmra.mxu0 %v2021
      %v2116 = vpop.f32.mrf.mxu0
      %v2117 = vadd.f32 %v1993, %v2116
      %v2118 = vpop.f32.mrf.mxu0
      %v2119 = vpop.f32.mrf.mxu0
      %v2120 = vadd.f32 %v1996, %v2119
      %v2121 = vpop.f32.mrf.mxu0
      %2122 = vdwg.mxu0
      %v2123 = vld [vmem:[%s11] sm:$0x1]
      %v2125 = vlaneseq
      %v2126 = vshrl.u32 %v2125, 7
      %v2127 = vsub.s32 0, %v2126
      %v2128 = vrot.slane %v2123, %v2127
      %v2130 = vadd.f32 %v2061, %v2128
      %v2131 = vadd.f32 %v2064, %v2128
      %v2132 = vadd.f32 %v2069, %v2128
      %v2133 = vadd.f32 %v2072, %v2128
      %v2134 = vadd.f32 %v2077, %v2128
      %v2135 = vadd.f32 %v2080, %v2128
      %v2136 = vadd.f32 %v2085, %v2128
      %v2137 = vadd.f32 %v2088, %v2128
      %v2138 = vadd.f32 %v2093, %v2128
      %v2139 = vadd.f32 %v2096, %v2128
      %v2140 = vadd.f32 %v2101, %v2128
      %v2141 = vadd.f32 %v2104, %v2128
      %v2142 = vadd.f32 %v2109, %v2128
      %v2143 = vadd.f32 %v2112, %v2128
      %v2144 = vadd.f32 %v2117, %v2128
      %v2145 = vadd.f32 %v2120, %v2128
      %v2146 = vmax.f32 %v2130, 0.0
      %v2147 = vmax.f32 %v2131, 0.0
      %v2148 = vmax.f32 %v2132, 0.0
      %v2149 = vmax.f32 %v2133, 0.0
      %v2150 = vmax.f32 %v2134, 0.0
      %v2151 = vmax.f32 %v2135, 0.0
      %v2152 = vmax.f32 %v2136, 0.0
      %v2153 = vmax.f32 %v2137, 0.0
      %v2154 = vmax.f32 %v2138, 0.0
      %v2155 = vmax.f32 %v2139, 0.0
      %v2156 = vmax.f32 %v2140, 0.0
      %v2157 = vmax.f32 %v2141, 0.0
      %v2158 = vmax.f32 %v2142, 0.0
      %v2159 = vmax.f32 %v2143, 0.0
      %v2160 = vmax.f32 %v2144, 0.0
      %v2161 = vmax.f32 %v2145, 0.0
      %v2162 = vpack.c.bf16 %v2147, %v2146
      %v2163 = vpack.c.bf16 %v2149, %v2148
      %v2164 = vpack.c.bf16 %v2151, %v2150
      %v2165 = vpack.c.bf16 %v2153, %v2152
      %v2166 = vpack.c.bf16 %v2155, %v2154
      %v2167 = vpack.c.bf16 %v2157, %v2156
      %v2168 = vpack.c.bf16 %v2159, %v2158
      %v2169 = vpack.c.bf16 %v2161, %v2160
      %v2178 = vunpack.c.l.b16 %v2162
      %v2179 = vunpack.c.h.b16 %v2162
      %v2180 = vunpack.c.l.b16 %v2163
      %v2181 = vunpack.c.h.b16 %v2163
      %v2182 = vunpack.c.l.b16 %v2164
      %v2183 = vunpack.c.h.b16 %v2164
      %v2184 = vunpack.c.l.b16 %v2165
      %v2185 = vunpack.c.h.b16 %v2165
      %v2186 = vunpack.c.l.b16 %v2166
      %v2187 = vunpack.c.h.b16 %v2166
      %v2188 = vunpack.c.l.b16 %v2167
      %v2189 = vunpack.c.h.b16 %v2167
      %v2190 = vunpack.c.l.b16 %v2168
      %v2191 = vunpack.c.h.b16 %v2168
      %v2192 = vunpack.c.l.b16 %v2169
      %v2193 = vunpack.c.h.b16 %v2169
      %v2194 = vpack.c.b16 %v2178, %v2178
      %v2195 = vpack.c.b16 %v2179, %v2179
      %v2196 = vpack.c.b16 %v2180, %v2180
      %v2197 = vpack.c.b16 %v2181, %v2181
      %v2198 = vpack.c.b16 %v2182, %v2182
      %v2199 = vpack.c.b16 %v2183, %v2183
      %v2200 = vpack.c.b16 %v2184, %v2184
      %v2201 = vpack.c.b16 %v2185, %v2185
      %v2202 = vpack.c.b16 %v2186, %v2186
      %v2203 = vpack.c.b16 %v2187, %v2187
      %v2204 = vpack.c.b16 %v2188, %v2188
      %v2205 = vpack.c.b16 %v2189, %v2189
      %v2206 = vpack.c.b16 %v2190, %v2190
      %v2207 = vpack.c.b16 %v2191, %v2191
      %v2208 = vpack.c.b16 %v2192, %v2192
      %v2209 = vpack.c.b16 %v2193, %v2193
      %vm2226 = vcmask 60416
      %2227 = vst.msk [vmem:[%s580] sm:$0xf] %vm2226, %v2194
      %2228 = vst.msk [vmem:[%s580 + $0x4] sm:$0xf] %vm2226, %v2195
      %2229 = vst.msk [vmem:[%s580 + $0x8] sm:$0xf] %vm2226, %v2196
      %2230 = vst.msk [vmem:[%s580 + $0xc] sm:$0xf] %vm2226, %v2197
      %2231 = vst.msk [vmem:[%s580 + $0x10] sm:$0xf] %vm2226, %v2198
      %2232 = vst.msk [vmem:[%s580 + $0x14] sm:$0xf] %vm2226, %v2199
      %2233 = vst.msk [vmem:[%s580 + $0x18] sm:$0xf] %vm2226, %v2200
      %2234 = vst.msk [vmem:[%s580 + $0x1c] sm:$0xf] %vm2226, %v2201
      %2235 = vst.msk [vmem:[%s580 + $0x20] sm:$0xf] %vm2226, %v2202
      %2236 = vst.msk [vmem:[%s580 + $0x24] sm:$0xf] %vm2226, %v2203
      %2237 = vst.msk [vmem:[%s580 + $0x28] sm:$0xf] %vm2226, %v2204
      %2238 = vst.msk [vmem:[%s580 + $0x2c] sm:$0xf] %vm2226, %v2205
      %2239 = vst.msk [vmem:[%s580 + $0x30] sm:$0xf] %vm2226, %v2206
      %2240 = vst.msk [vmem:[%s580 + $0x34] sm:$0xf] %vm2226, %v2207
      %2241 = vst.msk [vmem:[%s580 + $0x38] sm:$0xf] %vm2226, %v2208
      %2242 = vst.msk [vmem:[%s580 + $0x3c] sm:$0xf] %vm2226, %v2209
      %s2243 = smul.u32 8, %s28
      %p2244 = scmp.lt.s32.totalorder %s27, 1
      %s2245 = scalar_select %p2244, %s27, 1
      %p2246 = scmp.lt.s32.totalorder %s2243, 15
      %s2247 = scalar_select %p2246, %s2243, 15
      %s2248 = smul.addr %s2247, 2
      %s2249 = smul.addr %s2245, 32
      %s2250 = sadd.s32 %s2248, %s2249
      %s2251 = smul.addr %s2250, 4
      %s2252 = scalar_lea.vmem %s12, %s2251
      // Predicated region
      $region69: #{csp_layer.1} parent=67 // pred_check
        %p2253 = pneg %p344
      $region70: #{csp_layer.1} parent=67 // pred_check_branch
        %2255 = sbr.rel (%p2253) target = $region72
      $region71: #{csp_layer.1} parent=67 // pred_region
        %s2256 = smul.u32 8, %s28
      $region72: #{csp_layer.1} parent=67 // pred_fallthru
        _
    $region68: #{csp_layer.1} parent=5 // pred_fallthru
      _
    %p2257 = scmp.le.s32.totalorder 2, %s18
    // Predicated region
    $region73: #{csp_layer.1} parent=5 // pred_check
      %p2258 = pneg %p2257
    $region74: #{csp_layer.1} parent=5 // pred_check_branch
      %2260 = sbr.rel (%p2258) target = $region76
    $region75: #{csp_layer.1} parent=5 // pred_region
      %s2261 = ssub.s32 %s18, 2
      // Predicated region
      $region77: #{csp_layer.1} parent=75 // pred_check
        %p2262 = pneg %p350
      $region78: #{csp_layer.1} parent=75 // pred_check_branch
        %2264 = sbr.rel (%p2262) target = $region80
      $region79: #{csp_layer.1} parent=75 // pred_region
        %s2265 = smul.u32 8, %s30
        %p2266 = scmp.lt.s32.totalorder %s29, 1
        %s2267 = scalar_select %p2266, %s29, 1
        %p2268 = scmp.lt.s32.totalorder %s2265, 15
        %s2269 = scalar_select %p2268, %s2265, 15
        %s2270 = smul.addr %s2269, 2
        %s2271 = smul.addr %s2267, 32
        %s2272 = sadd.s32 %s2270, %s2271
        %s2273 = smul.addr %s2272, 4
        %s2274 = scalar_lea.vmem %s12, %s2273
      $region80: #{csp_layer.1} parent=75 // pred_fallthru
        _
    $region76: #{csp_layer.1} parent=5 // pred_fallthru
      _
  $region6: #{csp_layer.1} parent=0 // loop_footer
    %s22 = sadd.s32 1, %s18
  $region7: #{csp_layer.1} parent=0 // loop_footer_branch
    %17 = sbr.rel target = $region3
  $region8: #{csp_layer.1} parent=0 // loop_exit
    _

</llo_original>
